<compile_context>
chip_gen: v7x
topology: tpu7x:2x2x1
jax: 0.10.0
libtpu: 0.0.40
codegen_flags: <defaults>
</compile_context>

<pallas_src>
import functools

import jax
import jax.numpy as jnp
from jax.experimental import pallas as pl
from jax.experimental.pallas import tpu as pltpu

# Model hyper-parameters (consistent with the module's __init__).
HEAD_NUM = 4
QKV_DIM = 8
EMB = HEAD_NUM * QKV_DIM          # embedding_dim = 32
FF_HIDDEN = 64                    # ff_hidden_dim
EPS = 1e-5                        # InstanceNorm1d default eps


def encoder_layer_kernel(x_ref, wqkv_ref, wc_ref, w1_ref, w2_ref, vec_ref,
                         o_ref, *, bt, n):
    rows = bt * n
    xf = x_ref[...]                                   # (rows, E) f32

    vec = vec_ref[...]                                # (7, FF) f32
    bc = vec[0:1, :EMB]
    g1 = vec[1:2, :EMB]
    be1 = vec[2:3, :EMB]
    b1 = vec[3:4, :]
    b2 = vec[4:5, :EMB]
    g2 = vec[5:6, :EMB]
    be2 = vec[6:7, :EMB]

    # --- fused QKV projection (1/sqrt(D) already folded into the Q columns) ---
    qkv = jnp.dot(xf.astype(jnp.bfloat16), wqkv_ref[...],
                  preferred_element_type=jnp.float32)  # (rows, 3E) f32

    # --- regroup heads into a single (H*bt, n, D) batch (leading-dim ops only) ---
    def gather_heads(base):
        parts = [
            qkv[:, base + h * QKV_DIM: base + (h + 1) * QKV_DIM]
            .astype(jnp.bfloat16)
            .reshape(1, bt, n, QKV_DIM)
            for h in range(HEAD_NUM)
        ]
        return jnp.concatenate(parts, axis=0).reshape(HEAD_NUM * bt, n, QKV_DIM)

    qh = gather_heads(0)           # (H*bt, n, D) bf16  (already scaled)
    kh = gather_heads(EMB)
    vh = gather_heads(2 * EMB)

    # --- multi-head attention, one batched einsum over the fused H*bt axis ---
    s = jnp.einsum('gnd,gmd->gnm', qh, kh,
                   preferred_element_type=jnp.float32)      # (H*bt, n, n) f32
    s = s - jnp.max(s, axis=-1, keepdims=True)
    p = jnp.exp(s)
    p = p * pl.reciprocal(jnp.sum(p, axis=-1, keepdims=True), approx=True)

    oh = jnp.einsum('gnm,gmd->gnd', p.astype(jnp.bfloat16), vh,
                    preferred_element_type=jnp.float32)     # (H*bt, n, D) f32

    # Undo the head grouping: concat heads back along lanes -> (rows, H*D),
    # then a single combine matmul with contraction depth K = 32.
    oh = oh.reshape(HEAD_NUM, rows, QKV_DIM)
    oc = jnp.concatenate([oh[h] for h in range(HEAD_NUM)], axis=-1)  # (rows, E)
    mh = jnp.dot(oc.astype(jnp.bfloat16), wc_ref[...],
                 preferred_element_type=jnp.float32) + bc            # (rows, E)

    # --- Add & InstanceNorm1d (normalize over the sequence axis per channel) ---
    def add_norm(a, b, g, be):
        added = (a + b).reshape(bt, n, EMB)                 # f32
        mu = jnp.mean(added, axis=1, keepdims=True)         # (bt, 1, E)
        c = added - mu
        var = jnp.mean(c * c, axis=1, keepdims=True)
        normed = c * jax.lax.rsqrt(var + EPS)
        return normed.reshape(rows, EMB) * g + be

    out1 = add_norm(xf, mh, g1, be1)

    # --- Feed-forward: W2(relu(W1(x))) ---
    h1 = jnp.maximum(
        jnp.dot(out1.astype(jnp.bfloat16), w1_ref[...],
                preferred_element_type=jnp.float32) + b1, 0.0)
    ff = jnp.dot(h1.astype(jnp.bfloat16), w2_ref[...],
                 preferred_element_type=jnp.float32) + b2

    # --- Add & InstanceNorm1d #2 ---
    o_ref[...] = add_norm(out1, ff, g2, be2)


def pack_params(raw):
    """Pack PyTorch-layout params into the fused kernel parameter set."""
    (Wq, Wk, Wv, Wc, bc, g1, be1, W1, b1, W2, b2, g2, be2) = raw
    scale = 1.0 / jnp.sqrt(jnp.float32(QKV_DIM))
    # nn.Linear stores (out, in); the kernel does x @ W, so transpose here.
    # 1/sqrt(D) is folded into the Q columns *before* the bf16 cast.
    wqkv = jnp.concatenate([Wq.T * scale, Wk.T, Wv.T], axis=1).astype(jnp.bfloat16)
    wc = Wc.T.astype(jnp.bfloat16)                                    # (E, E)
    w1 = W1.T.astype(jnp.bfloat16)                                    # (E, FF)
    w2 = W2.T.astype(jnp.bfloat16)                                    # (FF, E)

    def pad_row(v):
        return jnp.pad(v, (0, FF_HIDDEN - v.shape[0]))[None, :]

    vec = jnp.concatenate(
        [pad_row(bc), pad_row(g1), pad_row(be1), b1[None, :],
         pad_row(b2), pad_row(g2), pad_row(be2)], axis=0).astype(jnp.float32)
    return (wqkv, wc, w1, w2, vec)


def encoder_layer(x, packed, *, block_batch=None):
    B, N, E = x.shape
    assert E == EMB
    wqkv, wc, w1, w2, vec = packed

    if block_batch is None:
        # Target ~512 rows per grid step; keep >= 2 grid steps when possible so
        # v7x's two TensorCores both get work (v5e/v6e just see fewer, bigger steps).
        limit = max(1, min(B, 512 // max(1, N)))
        if B >= 2:
            limit = min(limit, B // 2)
        block_batch = 1
        for d in range(limit, 0, -1):
            if B % d == 0:
                block_batch = d
                break
    assert B % block_batch == 0, "batch must be divisible by block_batch"
    grid = (B // block_batch,)
    rows = block_batch * N

    xf = x.reshape(B * N, E)

    def full2(i):
        return (0, 0)

    kernel = functools.partial(encoder_layer_kernel, bt=block_batch, n=N)

    grid_spec = pltpu.PrefetchScalarGridSpec(
        num_scalar_prefetch=0,
        grid=grid,
        in_specs=[
            pl.BlockSpec((rows, E), lambda i: (i, 0)),
            pl.BlockSpec(wqkv.shape, full2),
            pl.BlockSpec(wc.shape, full2),
            pl.BlockSpec(w1.shape, full2),
            pl.BlockSpec(w2.shape, full2),
            pl.BlockSpec(vec.shape, full2),
        ],
        out_specs=pl.BlockSpec((rows, E), lambda i: (i, 0)),
    )
    out2d = pl.pallas_call(
        kernel,
        out_shape=jax.ShapeDtypeStruct((B * N, E), jnp.float32),
        grid_spec=grid_spec,
        compiler_params=pltpu.CompilerParams(
            dimension_semantics=("parallel",),
            vmem_limit_bytes=32 * 1024 * 1024,
        ),
    )(xf, wqkv, wc, w1, w2, vec)
    return out2d.reshape(B, N, E)


def encoder_layer_reference(x, raw):
    """Plain-JAX f32 reference mirroring the PyTorch forward, for validation."""
    (Wq, Wk, Wv, Wc, bc, g1, be1, W1, b1, W2, b2, g2, be2) = raw
    B, N, E = x.shape
    D = QKV_DIM

    def heads(t):  # (B, N, H*D) -> (B, H, N, D)
        return t.reshape(B, N, HEAD_NUM, D).transpose(0, 2, 1, 3)

    q, k, v = heads(x @ Wq.T), heads(x @ Wk.T), heads(x @ Wv.T)
    score = jnp.einsum('bhnd,bhmd->bhnm', q, k) / jnp.sqrt(jnp.float32(D))
    w = jax.nn.softmax(score, axis=-1)
    out = jnp.einsum('bhnm,bhmd->bhnd', w, v)
    out_concat = out.transpose(0, 2, 1, 3).reshape(B, N, HEAD_NUM * D)
    mh_out = out_concat @ Wc.T + bc

    def add_norm(a, b_, g, be):
        added = a + b_
        mu = jnp.mean(added, axis=1, keepdims=True)
        var = jnp.mean((added - mu) ** 2, axis=1, keepdims=True)
        return (added - mu) * jax.lax.rsqrt(var + EPS) * g + be

    out1 = add_norm(x, mh_out, g1, be1)
    ff = jnp.maximum(out1 @ W1.T + b1, 0.0) @ W2.T + b2
    return add_norm(out1, ff, g2, be2)


if __name__ == "__main__":
    B, N = 8, 8
    key = jax.random.PRNGKey(0)
    ks = jax.random.split(key, 14)

    x = jax.random.normal(ks[0], (B, N, EMB), dtype=jnp.float32)

    def init(k, shape, scale=0.1):
        return (scale * jax.random.normal(k, shape)).astype(jnp.float32)

    # Raw params in PyTorch nn.Linear layout: weight is (out_features, in_features).
    raw = (
        init(ks[1], (HEAD_NUM * QKV_DIM, EMB)),                 # Wq
        init(ks[2], (HEAD_NUM * QKV_DIM, EMB)),                 # Wk
        init(ks[3], (HEAD_NUM * QKV_DIM, EMB)),                 # Wv
        init(ks[4], (EMB, HEAD_NUM * QKV_DIM)),                 # multi_head_combine W
        init(ks[5], (EMB,)),                                    # multi_head_combine b
        1.0 + 0.1 * jax.random.normal(ks[10], (EMB,)),          # InstanceNorm1 gamma
        0.1 * jax.random.normal(ks[11], (EMB,)),                # InstanceNorm1 beta
        init(ks[6], (FF_HIDDEN, EMB)),                          # FF W1
        init(ks[7], (FF_HIDDEN,)),                              # FF b1
        init(ks[8], (EMB, FF_HIDDEN)),                          # FF W2
        init(ks[9], (EMB,)),                                    # FF b2
        1.0 + 0.1 * jax.random.normal(ks[12], (EMB,)),          # InstanceNorm2 gamma
        0.1 * jax.random.normal(ks[13], (EMB,)),                # InstanceNorm2 beta
    )
    raw = tuple(p.astype(jnp.float32) for p in raw)
    packed = pack_params(raw)

    out = encoder_layer(x, packed)   # B=8, N=8 -> block_batch=4, grid=(2,)
    jax.block_until_ready(out)

    ref = encoder_layer_reference(x, raw)
    assert out.shape == (B, N, EMB)
    # bf16 matmul operands + approx reciprocal -> relaxed tolerance vs f32 ref.
    max_err = float(jnp.max(jnp.abs(out - ref)))
    assert jnp.allclose(out, ref, atol=5e-2, rtol=5e-2), \
        f"mismatch vs reference (max abs err {max_err})"

    print("KERNEL_OK")
</pallas_src>

<mosaic_0001>
module attributes {stable_mosaic.version = 11 : i64} {
  func.func @encoder_layer_kernel(%arg0: i32, %arg1: memref<32x32xf32, #tpu.memory_space<vmem>>, %arg2: memref<32x96xbf16, #tpu.memory_space<vmem>>, %arg3: memref<32x32xbf16, #tpu.memory_space<vmem>>, %arg4: memref<32x64xbf16, #tpu.memory_space<vmem>>, %arg5: memref<64x32xbf16, #tpu.memory_space<vmem>>, %arg6: memref<7x64xf32, #tpu.memory_space<vmem>>, %arg7: memref<32x32xf32, #tpu.memory_space<vmem>>) attributes {dimension_semantics = [#tpu.dimension_semantics<parallel>], iteration_bounds = array<i64: 2>, scalar_prefetch = 0 : i64, scratch_operands = 0 : i64, tpu.core_type = #tpu.core_type<tc>, window_params = [{transform_indices = @transform_0, window_bounds = array<i64: 32, 32>}, {pipeline_mode = #tpu.pipeline_mode<synchronous>, transform_indices = @transform_1, window_bounds = array<i64: 32, 96>}, {pipeline_mode = #tpu.pipeline_mode<synchronous>, transform_indices = @transform_2, window_bounds = array<i64: 32, 32>}, {pipeline_mode = #tpu.pipeline_mode<synchronous>, transform_indices = @transform_3, window_bounds = array<i64: 32, 64>}, {pipeline_mode = #tpu.pipeline_mode<synchronous>, transform_indices = @transform_4, window_bounds = array<i64: 64, 32>}, {pipeline_mode = #tpu.pipeline_mode<synchronous>, transform_indices = @transform_5, window_bounds = array<i64: 7, 64>}, {transform_indices = @transform_6, window_bounds = array<i64: 32, 32>}]} {
    %c0 = arith.constant 0 : index
    %c0_0 = arith.constant 0 : index
    %0 = vector.load %arg1[%c0, %c0_0] : memref<32x32xf32, #tpu.memory_space<vmem>>, vector<32x32xf32>
    %c0_1 = arith.constant 0 : index
    %c0_2 = arith.constant 0 : index
    %1 = vector.load %arg6[%c0_1, %c0_2] : memref<7x64xf32, #tpu.memory_space<vmem>>, vector<7x64xf32>
    %2 = vector.extract_strided_slice %1 {offsets = [0, 0], sizes = [1, 32], strides = [1, 1]} : vector<7x64xf32> to vector<1x32xf32>
    %3 = vector.extract_strided_slice %1 {offsets = [1, 0], sizes = [1, 32], strides = [1, 1]} : vector<7x64xf32> to vector<1x32xf32>
    %4 = vector.extract_strided_slice %1 {offsets = [2, 0], sizes = [1, 32], strides = [1, 1]} : vector<7x64xf32> to vector<1x32xf32>
    %5 = vector.extract_strided_slice %1 {offsets = [3, 0], sizes = [1, 64], strides = [1, 1]} : vector<7x64xf32> to vector<1x64xf32>
    %6 = vector.extract_strided_slice %1 {offsets = [4, 0], sizes = [1, 32], strides = [1, 1]} : vector<7x64xf32> to vector<1x32xf32>
    %7 = vector.extract_strided_slice %1 {offsets = [5, 0], sizes = [1, 32], strides = [1, 1]} : vector<7x64xf32> to vector<1x32xf32>
    %8 = vector.extract_strided_slice %1 {offsets = [6, 0], sizes = [1, 32], strides = [1, 1]} : vector<7x64xf32> to vector<1x32xf32>
    %9 = arith.truncf %0 : vector<32x32xf32> to vector<32x32xbf16>
    %c0_3 = arith.constant 0 : index
    %c0_4 = arith.constant 0 : index
    %10 = vector.load %arg2[%c0_3, %c0_4] : memref<32x96xbf16, #tpu.memory_space<vmem>>, vector<32x96xbf16>
    %cst = arith.constant dense<0.000000e+00> : vector<32x96xf32>
    %11 = tpu.matmul %9, %10, %cst {dimension_numbers = #tpu.dot_dimension_numbers<[1], [0], [0], [1], [0, 0, 1, 1], [], []>} : vector<32x32xbf16>, vector<32x96xbf16>, vector<32x96xf32> -> vector<32x96xf32>
    %12 = vector.extract_strided_slice %11 {offsets = [0, 0], sizes = [32, 8], strides = [1, 1]} : vector<32x96xf32> to vector<32x8xf32>
    %13 = arith.truncf %12 : vector<32x8xf32> to vector<32x8xbf16>
    %14 = vector.shape_cast %13 : vector<32x8xbf16> to vector<1x4x8x8xbf16>
    %15 = vector.extract_strided_slice %11 {offsets = [0, 8], sizes = [32, 8], strides = [1, 1]} : vector<32x96xf32> to vector<32x8xf32>
    %16 = arith.truncf %15 : vector<32x8xf32> to vector<32x8xbf16>
    %17 = vector.shape_cast %16 : vector<32x8xbf16> to vector<1x4x8x8xbf16>
    %18 = vector.extract_strided_slice %11 {offsets = [0, 16], sizes = [32, 8], strides = [1, 1]} : vector<32x96xf32> to vector<32x8xf32>
    %19 = arith.truncf %18 : vector<32x8xf32> to vector<32x8xbf16>
    %20 = vector.shape_cast %19 : vector<32x8xbf16> to vector<1x4x8x8xbf16>
    %21 = vector.extract_strided_slice %11 {offsets = [0, 24], sizes = [32, 8], strides = [1, 1]} : vector<32x96xf32> to vector<32x8xf32>
    %22 = arith.truncf %21 : vector<32x8xf32> to vector<32x8xbf16>
    %23 = vector.shape_cast %22 : vector<32x8xbf16> to vector<1x4x8x8xbf16>
    %24 = tpu.concatenate %14, %17, %20, %23 in 0 : vector<1x4x8x8xbf16>, vector<1x4x8x8xbf16>, vector<1x4x8x8xbf16>, vector<1x4x8x8xbf16> -> vector<4x4x8x8xbf16>
    %25 = vector.shape_cast %24 : vector<4x4x8x8xbf16> to vector<16x8x8xbf16>
    %26 = vector.extract_strided_slice %11 {offsets = [0, 32], sizes = [32, 8], strides = [1, 1]} : vector<32x96xf32> to vector<32x8xf32>
    %27 = arith.truncf %26 : vector<32x8xf32> to vector<32x8xbf16>
    %28 = vector.shape_cast %27 : vector<32x8xbf16> to vector<1x4x8x8xbf16>
    %29 = vector.extract_strided_slice %11 {offsets = [0, 40], sizes = [32, 8], strides = [1, 1]} : vector<32x96xf32> to vector<32x8xf32>
    %30 = arith.truncf %29 : vector<32x8xf32> to vector<32x8xbf16>
    %31 = vector.shape_cast %30 : vector<32x8xbf16> to vector<1x4x8x8xbf16>
    %32 = vector.extract_strided_slice %11 {offsets = [0, 48], sizes = [32, 8], strides = [1, 1]} : vector<32x96xf32> to vector<32x8xf32>
    %33 = arith.truncf %32 : vector<32x8xf32> to vector<32x8xbf16>
    %34 = vector.shape_cast %33 : vector<32x8xbf16> to vector<1x4x8x8xbf16>
    %35 = vector.extract_strided_slice %11 {offsets = [0, 56], sizes = [32, 8], strides = [1, 1]} : vector<32x96xf32> to vector<32x8xf32>
    %36 = arith.truncf %35 : vector<32x8xf32> to vector<32x8xbf16>
    %37 = vector.shape_cast %36 : vector<32x8xbf16> to vector<1x4x8x8xbf16>
    %38 = tpu.concatenate %28, %31, %34, %37 in 0 : vector<1x4x8x8xbf16>, vector<1x4x8x8xbf16>, vector<1x4x8x8xbf16>, vector<1x4x8x8xbf16> -> vector<4x4x8x8xbf16>
    %39 = vector.shape_cast %38 : vector<4x4x8x8xbf16> to vector<16x8x8xbf16>
    %40 = vector.extract_strided_slice %11 {offsets = [0, 64], sizes = [32, 8], strides = [1, 1]} : vector<32x96xf32> to vector<32x8xf32>
    %41 = arith.truncf %40 : vector<32x8xf32> to vector<32x8xbf16>
    %42 = vector.shape_cast %41 : vector<32x8xbf16> to vector<1x4x8x8xbf16>
    %43 = vector.extract_strided_slice %11 {offsets = [0, 72], sizes = [32, 8], strides = [1, 1]} : vector<32x96xf32> to vector<32x8xf32>
    %44 = arith.truncf %43 : vector<32x8xf32> to vector<32x8xbf16>
    %45 = vector.shape_cast %44 : vector<32x8xbf16> to vector<1x4x8x8xbf16>
    %46 = vector.extract_strided_slice %11 {offsets = [0, 80], sizes = [32, 8], strides = [1, 1]} : vector<32x96xf32> to vector<32x8xf32>
    %47 = arith.truncf %46 : vector<32x8xf32> to vector<32x8xbf16>
    %48 = vector.shape_cast %47 : vector<32x8xbf16> to vector<1x4x8x8xbf16>
    %49 = vector.extract_strided_slice %11 {offsets = [0, 88], sizes = [32, 8], strides = [1, 1]} : vector<32x96xf32> to vector<32x8xf32>
    %50 = arith.truncf %49 : vector<32x8xf32> to vector<32x8xbf16>
    %51 = vector.shape_cast %50 : vector<32x8xbf16> to vector<1x4x8x8xbf16>
    %52 = tpu.concatenate %42, %45, %48, %51 in 0 : vector<1x4x8x8xbf16>, vector<1x4x8x8xbf16>, vector<1x4x8x8xbf16>, vector<1x4x8x8xbf16> -> vector<4x4x8x8xbf16>
    %53 = vector.shape_cast %52 : vector<4x4x8x8xbf16> to vector<16x8x8xbf16>
    "tpu.trace_start"() <{level = 10 : i32, message = "gnd,gmd->gnm"}> : () -> ()
    %cst_5 = arith.constant dense<0.000000e+00> : vector<16x8x8xf32>
    %54 = tpu.matmul %25, %39, %cst_5 {dimension_numbers = #tpu.dot_dimension_numbers<[2], [2], [1], [1], [0, 0, 0, 1, 1, 1], [0], [0]>} : vector<16x8x8xbf16>, vector<16x8x8xbf16>, vector<16x8x8xf32> -> vector<16x8x8xf32>
    "tpu.trace_stop"() : () -> ()
    %cst_6 = arith.constant dense<0xFF800000> : vector<16x8xf32>
    %55 = vector.multi_reduction <maximumf>, %54, %cst_6 [2] : vector<16x8x8xf32> to vector<16x8xf32>
    %56 = vector.shape_cast %55 : vector<16x8xf32> to vector<16x8x1xf32>
    %57 = vector.broadcast %56 : vector<16x8x1xf32> to vector<16x8x8xf32>
    %58 = arith.subf %54, %57 : vector<16x8x8xf32>
    %59 = math.exp %58 : vector<16x8x8xf32>
    %cst_7 = arith.constant dense<0.000000e+00> : vector<16x8xf32>
    %60 = vector.multi_reduction <add>, %59, %cst_7 [2] : vector<16x8x8xf32> to vector<16x8xf32>
    %61 = vector.shape_cast %60 : vector<16x8xf32> to vector<16x8x1xf32>
    %62 = tpu.reciprocal %61 {approx = true} : vector<16x8x1xf32> -> vector<16x8x1xf32>
    %63 = vector.broadcast %62 : vector<16x8x1xf32> to vector<16x8x8xf32>
    %64 = arith.mulf %59, %63 : vector<16x8x8xf32>
    %65 = arith.truncf %64 : vector<16x8x8xf32> to vector<16x8x8xbf16>
    "tpu.trace_start"() <{level = 10 : i32, message = "gnm,gmd->gnd"}> : () -> ()
    %cst_8 = arith.constant dense<0.000000e+00> : vector<16x8x8xf32>
    %66 = tpu.matmul %65, %53, %cst_8 {dimension_numbers = #tpu.dot_dimension_numbers<[2], [1], [1], [2], [0, 0, 0, 1, 1, 2], [0], [0]>} : vector<16x8x8xbf16>, vector<16x8x8xbf16>, vector<16x8x8xf32> -> vector<16x8x8xf32>
    "tpu.trace_stop"() : () -> ()
    %67 = vector.shape_cast %66 : vector<16x8x8xf32> to vector<4x32x8xf32>
    %68 = vector.extract_strided_slice %67 {offsets = [0, 0, 0], sizes = [1, 32, 8], strides = [1, 1, 1]} : vector<4x32x8xf32> to vector<1x32x8xf32>
    %69 = vector.shape_cast %68 : vector<1x32x8xf32> to vector<32x8xf32>
    %70 = vector.extract_strided_slice %67 {offsets = [1, 0, 0], sizes = [1, 32, 8], strides = [1, 1, 1]} : vector<4x32x8xf32> to vector<1x32x8xf32>
    %71 = vector.shape_cast %70 : vector<1x32x8xf32> to vector<32x8xf32>
    %72 = vector.extract_strided_slice %67 {offsets = [2, 0, 0], sizes = [1, 32, 8], strides = [1, 1, 1]} : vector<4x32x8xf32> to vector<1x32x8xf32>
    %73 = vector.shape_cast %72 : vector<1x32x8xf32> to vector<32x8xf32>
    %74 = vector.extract_strided_slice %67 {offsets = [3, 0, 0], sizes = [1, 32, 8], strides = [1, 1, 1]} : vector<4x32x8xf32> to vector<1x32x8xf32>
    %75 = vector.shape_cast %74 : vector<1x32x8xf32> to vector<32x8xf32>
    %76 = tpu.concatenate %69, %71, %73, %75 in 1 : vector<32x8xf32>, vector<32x8xf32>, vector<32x8xf32>, vector<32x8xf32> -> vector<32x32xf32>
    %77 = arith.truncf %76 : vector<32x32xf32> to vector<32x32xbf16>
    %c0_9 = arith.constant 0 : index
    %c0_10 = arith.constant 0 : index
    %78 = vector.load %arg3[%c0_9, %c0_10] : memref<32x32xbf16, #tpu.memory_space<vmem>>, vector<32x32xbf16>
    %cst_11 = arith.constant dense<0.000000e+00> : vector<32x32xf32>
    %79 = tpu.matmul %77, %78, %cst_11 {dimension_numbers = #tpu.dot_dimension_numbers<[1], [0], [0], [1], [0, 0, 1, 1], [], []>} : vector<32x32xbf16>, vector<32x32xbf16>, vector<32x32xf32> -> vector<32x32xf32>
    %80 = vector.broadcast %2 : vector<1x32xf32> to vector<32x32xf32>
    %81 = arith.addf %79, %80 : vector<32x32xf32>
    %82 = arith.addf %0, %81 : vector<32x32xf32>
    %83 = vector.shape_cast %82 : vector<32x32xf32> to vector<4x8x32xf32>
    %cst_12 = arith.constant dense<0.000000e+00> : vector<4x32xf32>
    %84 = vector.multi_reduction <add>, %83, %cst_12 [1] : vector<4x8x32xf32> to vector<4x32xf32>
    %85 = vector.shape_cast %84 : vector<4x32xf32> to vector<4x1x32xf32>
    %cst_13 = arith.constant 8.000000e+00 : f32
    %86 = vector.broadcast %cst_13 : f32 to vector<4x1x32xf32>
    %87 = arith.divf %85, %86 : vector<4x1x32xf32>
    %88 = vector.broadcast %87 : vector<4x1x32xf32> to vector<4x8x32xf32>
    %89 = arith.subf %83, %88 : vector<4x8x32xf32>
    %90 = arith.mulf %89, %89 : vector<4x8x32xf32>
    %cst_14 = arith.constant dense<0.000000e+00> : vector<4x32xf32>
    %91 = vector.multi_reduction <add>, %90, %cst_14 [1] : vector<4x8x32xf32> to vector<4x32xf32>
    %92 = vector.shape_cast %91 : vector<4x32xf32> to vector<4x1x32xf32>
    %cst_15 = arith.constant 8.000000e+00 : f32
    %93 = vector.broadcast %cst_15 : f32 to vector<4x1x32xf32>
    %94 = arith.divf %92, %93 : vector<4x1x32xf32>
    %cst_16 = arith.constant 9.99999974E-6 : f32
    %95 = vector.broadcast %cst_16 : f32 to vector<4x1x32xf32>
    %96 = arith.addf %94, %95 : vector<4x1x32xf32>
    %97 = math.rsqrt %96 : vector<4x1x32xf32>
    %98 = vector.broadcast %97 : vector<4x1x32xf32> to vector<4x8x32xf32>
    %99 = arith.mulf %89, %98 : vector<4x8x32xf32>
    %100 = vector.shape_cast %99 : vector<4x8x32xf32> to vector<32x32xf32>
    %101 = vector.broadcast %3 : vector<1x32xf32> to vector<32x32xf32>
    %102 = arith.mulf %100, %101 : vector<32x32xf32>
    %103 = vector.broadcast %4 : vector<1x32xf32> to vector<32x32xf32>
    %104 = arith.addf %102, %103 : vector<32x32xf32>
    %105 = arith.truncf %104 : vector<32x32xf32> to vector<32x32xbf16>
    %c0_17 = arith.constant 0 : index
    %c0_18 = arith.constant 0 : index
    %106 = vector.load %arg4[%c0_17, %c0_18] : memref<32x64xbf16, #tpu.memory_space<vmem>>, vector<32x64xbf16>
    %cst_19 = arith.constant dense<0.000000e+00> : vector<32x64xf32>
    %107 = tpu.matmul %105, %106, %cst_19 {dimension_numbers = #tpu.dot_dimension_numbers<[1], [0], [0], [1], [0, 0, 1, 1], [], []>} : vector<32x32xbf16>, vector<32x64xbf16>, vector<32x64xf32> -> vector<32x64xf32>
    %108 = vector.broadcast %5 : vector<1x64xf32> to vector<32x64xf32>
    %109 = arith.addf %107, %108 : vector<32x64xf32>
    %cst_20 = arith.constant 0.000000e+00 : f32
    %110 = vector.broadcast %cst_20 : f32 to vector<32x64xf32>
    %111 = arith.maximumf %109, %110 : vector<32x64xf32>
    %112 = arith.truncf %111 : vector<32x64xf32> to vector<32x64xbf16>
    %c0_21 = arith.constant 0 : index
    %c0_22 = arith.constant 0 : index
    %113 = vector.load %arg5[%c0_21, %c0_22] : memref<64x32xbf16, #tpu.memory_space<vmem>>, vector<64x32xbf16>
    %cst_23 = arith.constant dense<0.000000e+00> : vector<32x32xf32>
    %114 = tpu.matmul %112, %113, %cst_23 {dimension_numbers = #tpu.dot_dimension_numbers<[1], [0], [0], [1], [0, 0, 1, 1], [], []>} : vector<32x64xbf16>, vector<64x32xbf16>, vector<32x32xf32> -> vector<32x32xf32>
    %115 = vector.broadcast %6 : vector<1x32xf32> to vector<32x32xf32>
    %116 = arith.addf %114, %115 : vector<32x32xf32>
    %117 = arith.addf %104, %116 : vector<32x32xf32>
    %118 = vector.shape_cast %117 : vector<32x32xf32> to vector<4x8x32xf32>
    %cst_24 = arith.constant dense<0.000000e+00> : vector<4x32xf32>
    %119 = vector.multi_reduction <add>, %118, %cst_24 [1] : vector<4x8x32xf32> to vector<4x32xf32>
    %120 = vector.shape_cast %119 : vector<4x32xf32> to vector<4x1x32xf32>
    %cst_25 = arith.constant 8.000000e+00 : f32
    %121 = vector.broadcast %cst_25 : f32 to vector<4x1x32xf32>
    %122 = arith.divf %120, %121 : vector<4x1x32xf32>
    %123 = vector.broadcast %122 : vector<4x1x32xf32> to vector<4x8x32xf32>
    %124 = arith.subf %118, %123 : vector<4x8x32xf32>
    %125 = arith.mulf %124, %124 : vector<4x8x32xf32>
    %cst_26 = arith.constant dense<0.000000e+00> : vector<4x32xf32>
    %126 = vector.multi_reduction <add>, %125, %cst_26 [1] : vector<4x8x32xf32> to vector<4x32xf32>
    %127 = vector.shape_cast %126 : vector<4x32xf32> to vector<4x1x32xf32>
    %cst_27 = arith.constant 8.000000e+00 : f32
    %128 = vector.broadcast %cst_27 : f32 to vector<4x1x32xf32>
    %129 = arith.divf %127, %128 : vector<4x1x32xf32>
    %cst_28 = arith.constant 9.99999974E-6 : f32
    %130 = vector.broadcast %cst_28 : f32 to vector<4x1x32xf32>
    %131 = arith.addf %129, %130 : vector<4x1x32xf32>
    %132 = math.rsqrt %131 : vector<4x1x32xf32>
    %133 = vector.broadcast %132 : vector<4x1x32xf32> to vector<4x8x32xf32>
    %134 = arith.mulf %124, %133 : vector<4x8x32xf32>
    %135 = vector.shape_cast %134 : vector<4x8x32xf32> to vector<32x32xf32>
    %136 = vector.broadcast %7 : vector<1x32xf32> to vector<32x32xf32>
    %137 = arith.mulf %135, %136 : vector<32x32xf32>
    %138 = vector.broadcast %8 : vector<1x32xf32> to vector<32x32xf32>
    %139 = arith.addf %137, %138 : vector<32x32xf32>
    %c0_29 = arith.constant 0 : index
    %c0_30 = arith.constant 0 : index
    %140 = vector.load %arg7[%c0_29, %c0_30] : memref<32x32xf32, #tpu.memory_space<vmem>>, vector<32x32xf32>
    tpu.vector_store %arg7[%c0_29, %c0_30], %139 {strides = array<i32>} : memref<32x32xf32, #tpu.memory_space<vmem>>, vector<32x32xf32>,
    return
  }
  func.func @transform_0(%arg0: i32) -> (i32, i32) {
    %c0_i32 = arith.constant 0 : i32
    %c0_i32_0 = arith.constant 0 : i32
    return %arg0, %c0_i32 : i32, i32
  }
  func.func @transform_1(%arg0: i32) -> (i32, i32) {
    %c0_i32 = arith.constant 0 : i32
    %c0_i32_0 = arith.constant 0 : i32
    %c0_i32_1 = arith.constant 0 : i32
    return %c0_i32, %c0_i32_0 : i32, i32
  }
  func.func @transform_2(%arg0: i32) -> (i32, i32) {
    %c0_i32 = arith.constant 0 : i32
    %c0_i32_0 = arith.constant 0 : i32
    %c0_i32_1 = arith.constant 0 : i32
    return %c0_i32, %c0_i32_0 : i32, i32
  }
  func.func @transform_3(%arg0: i32) -> (i32, i32) {
    %c0_i32 = arith.constant 0 : i32
    %c0_i32_0 = arith.constant 0 : i32
    %c0_i32_1 = arith.constant 0 : i32
    return %c0_i32, %c0_i32_0 : i32, i32
  }
  func.func @transform_4(%arg0: i32) -> (i32, i32) {
    %c0_i32 = arith.constant 0 : i32
    %c0_i32_0 = arith.constant 0 : i32
    %c0_i32_1 = arith.constant 0 : i32
    return %c0_i32, %c0_i32_0 : i32, i32
  }
  func.func @transform_5(%arg0: i32) -> (i32, i32) {
    %c0_i32 = arith.constant 0 : i32
    %c0_i32_0 = arith.constant 0 : i32
    %c0_i32_1 = arith.constant 0 : i32
    return %c0_i32, %c0_i32_0 : i32, i32
  }
  func.func @transform_6(%arg0: i32) -> (i32, i32) {
    %c0_i32 = arith.constant 0 : i32
    %c0_i32_0 = arith.constant 0 : i32
    return %arg0, %c0_i32 : i32, i32
  }
}

</mosaic_0001>

<llo_original>
// kernel: tpu_custom_call.1
$region0: #{tpu_custom_call.1}
  #allocation0 [shape = 'u32[]', space=smem, size = 0x4, offset = 0x4, fixed_abs, tag = 'smem constant byte address 0x4 - core index']
  #allocation1 [shape = 'u32[144,128]{1,0:T(1,128)}', space=vmem, size = 0x12000, scoped, tag = 'internal scratch']
  %s0 = inlined_call_operand.vmem [shape: f32[64,32], index: 0, kind: input, shape index: {}]
  %s1 = inlined_call_operand.vmem [shape: bf16[32,96], index: 1, kind: input, shape index: {}]
  %s2 = inlined_call_operand.vmem [shape: bf16[32,32], index: 2, kind: input, shape index: {}]
  %s3 = inlined_call_operand.vmem [shape: bf16[32,64], index: 3, kind: input, shape index: {}]
  %s4 = inlined_call_operand.vmem [shape: bf16[64,32], index: 4, kind: input, shape index: {}]
  %s5 = inlined_call_operand.vmem [shape: f32[7,64], index: 5, kind: input, shape index: {}]
  %s6 = inlined_call_operand.vmem [shape: f32[64,32], index: 6, kind: output, shape index: {}]
  %s7 = sld [smem:[#allocation0]]
  $region57: #{tpu_custom_call.1} parent=0
    _
  %s9 = ssub.s32 1, %s7
  %s10 = scalar_select 0, %s9, %s7
  loop: start=0, step=1, limit=4
  $region2: #{tpu_custom_call.1} parent=0 // loop_pre_header
    _
  $region3: #{tpu_custom_call.1} parent=0 // loop_header
    %s12 = sphi 0, %s16
    %p13 = scmp.ge.s32.totalorder %s12, 4
    %s22 = sphi 0, %s24
    %s25 = sphi 0, %s22
    %s26 = sphi 0, %s25
    %s42 = sphi 0, %s26
    %s46 = sphi 0, %s46
    %s48 = sphi 0, %s46
    %s49 = sphi 0, %s48
    %s63 = sphi 0, %s49
    %s67 = sphi 0, %s67
    %s69 = sphi 0, %s67
    %s70 = sphi 0, %s69
    %s84 = sphi 0, %s70
    %s88 = sphi 0, %s88
    %s90 = sphi 0, %s88
    %s91 = sphi 0, %s90
    %s105 = sphi 0, %s91
    %s109 = sphi 0, %s109
    %s111 = sphi 0, %s109
    %s112 = sphi 0, %s111
    %s126 = sphi 0, %s112
    %s130 = sphi 0, %s130
    %s132 = sphi 0, %s130
    %s133 = sphi 0, %s132
    %s147 = sphi 0, %s133
    %s153 = sphi 0, %s155
    %s156 = sphi 0, %s153
    %s157 = sphi 0, %s156
    %s173 = sphi 0, %s157
  $region4: #{tpu_custom_call.1} parent=0 // loop_header_branch
    %15 = sbr.rel (%p13) target = $region8
  $region5: #{tpu_custom_call.1} parent=0 // loop_body
    %s17 = ssub.s32 %s12, 1
    %s18 = ssub.s32 %s12, 2
    %s19 = sadd.s32 %s12, 1
    %s20 = ssub.s32 %s12, %s19
    %p21 = scmp.eq.s32.totalorder %s20, 0
    %s23 = sadd.s32 %s22, 1
    %s24 = scalar_select %p21, %s22, %s23
    %p27 = pneg %p21
    %p28 = scmp.eq.s32.totalorder %s12, 1
    %p29 = por %p27, %p28
    %p30 = scmp.ne.s32.totalorder %s22, %s25
    %p31 = scmp.eq.s32.totalorder %s12, 0
    %p32 = por %p30, %p31
    %p33 = scmp.ne.s32.totalorder %s22, %s25
    %p34 = scmp.eq.s32.totalorder %s17, 1
    %p35 = por %p33, %p34
    %p36 = scmp.ne.s32.totalorder %s25, %s26
    %p37 = scmp.eq.s32.totalorder %s17, 0
    %p38 = por %p36, %p37
    %p39 = scmp.ne.s32.totalorder %s25, %s26
    %p40 = scmp.eq.s32.totalorder %s18, 1
    %p41 = por %p39, %p40
    %p43 = scmp.ne.s32.totalorder %s26, %s42
    %p44 = scmp.eq.s32.totalorder %s18, 0
    %p45 = por %p43, %p44
    %s47 = sadd.s32 %s46, 1
    %p50 = scmp.eq.s32.totalorder %s12, 1
    %p51 = scmp.ne.s32.totalorder %s46, %s48
    %p52 = scmp.eq.s32.totalorder %s12, 0
    %p53 = por %p51, %p52
    %p54 = scmp.ne.s32.totalorder %s46, %s48
    %p55 = scmp.eq.s32.totalorder %s17, 1
    %p56 = por %p54, %p55
    %p57 = scmp.ne.s32.totalorder %s48, %s49
    %p58 = scmp.eq.s32.totalorder %s17, 0
    %p59 = por %p57, %p58
    %p60 = scmp.ne.s32.totalorder %s48, %s49
    %p61 = scmp.eq.s32.totalorder %s18, 1
    %p62 = por %p60, %p61
    %p64 = scmp.ne.s32.totalorder %s49, %s63
    %p65 = scmp.eq.s32.totalorder %s18, 0
    %p66 = por %p64, %p65
    %s68 = sadd.s32 %s67, 1
    %p71 = scmp.eq.s32.totalorder %s12, 1
    %p72 = scmp.ne.s32.totalorder %s67, %s69
    %p73 = scmp.eq.s32.totalorder %s12, 0
    %p74 = por %p72, %p73
    %p75 = scmp.ne.s32.totalorder %s67, %s69
    %p76 = scmp.eq.s32.totalorder %s17, 1
    %p77 = por %p75, %p76
    %p78 = scmp.ne.s32.totalorder %s69, %s70
    %p79 = scmp.eq.s32.totalorder %s17, 0
    %p80 = por %p78, %p79
    %p81 = scmp.ne.s32.totalorder %s69, %s70
    %p82 = scmp.eq.s32.totalorder %s18, 1
    %p83 = por %p81, %p82
    %p85 = scmp.ne.s32.totalorder %s70, %s84
    %p86 = scmp.eq.s32.totalorder %s18, 0
    %p87 = por %p85, %p86
    %s89 = sadd.s32 %s88, 1
    %p92 = scmp.eq.s32.totalorder %s12, 1
    %p93 = scmp.ne.s32.totalorder %s88, %s90
    %p94 = scmp.eq.s32.totalorder %s12, 0
    %p95 = por %p93, %p94
    %p96 = scmp.ne.s32.totalorder %s88, %s90
    %p97 = scmp.eq.s32.totalorder %s17, 1
    %p98 = por %p96, %p97
    %p99 = scmp.ne.s32.totalorder %s90, %s91
    %p100 = scmp.eq.s32.totalorder %s17, 0
    %p101 = por %p99, %p100
    %p102 = scmp.ne.s32.totalorder %s90, %s91
    %p103 = scmp.eq.s32.totalorder %s18, 1
    %p104 = por %p102, %p103
    %p106 = scmp.ne.s32.totalorder %s91, %s105
    %p107 = scmp.eq.s32.totalorder %s18, 0
    %p108 = por %p106, %p107
    %s110 = sadd.s32 %s109, 1
    %p113 = scmp.eq.s32.totalorder %s12, 1
    %p114 = scmp.ne.s32.totalorder %s109, %s111
    %p115 = scmp.eq.s32.totalorder %s12, 0
    %p116 = por %p114, %p115
    %p117 = scmp.ne.s32.totalorder %s109, %s111
    %p118 = scmp.eq.s32.totalorder %s17, 1
    %p119 = por %p117, %p118
    %p120 = scmp.ne.s32.totalorder %s111, %s112
    %p121 = scmp.eq.s32.totalorder %s17, 0
    %p122 = por %p120, %p121
    %p123 = scmp.ne.s32.totalorder %s111, %s112
    %p124 = scmp.eq.s32.totalorder %s18, 1
    %p125 = por %p123, %p124
    %p127 = scmp.ne.s32.totalorder %s112, %s126
    %p128 = scmp.eq.s32.totalorder %s18, 0
    %p129 = por %p127, %p128
    %s131 = sadd.s32 %s130, 1
    %p134 = scmp.eq.s32.totalorder %s12, 1
    %p135 = scmp.ne.s32.totalorder %s130, %s132
    %p136 = scmp.eq.s32.totalorder %s12, 0
    %p137 = por %p135, %p136
    %p138 = scmp.ne.s32.totalorder %s130, %s132
    %p139 = scmp.eq.s32.totalorder %s17, 1
    %p140 = por %p138, %p139
    %p141 = scmp.ne.s32.totalorder %s132, %s133
    %p142 = scmp.eq.s32.totalorder %s17, 0
    %p143 = por %p141, %p142
    %p144 = scmp.ne.s32.totalorder %s132, %s133
    %p145 = scmp.eq.s32.totalorder %s18, 1
    %p146 = por %p144, %p145
    %p148 = scmp.ne.s32.totalorder %s133, %s147
    %p149 = scmp.eq.s32.totalorder %s18, 0
    %p150 = por %p148, %p149
    %s151 = ssub.s32 %s12, %s19
    %p152 = scmp.eq.s32.totalorder %s151, 0
    %s154 = sadd.s32 %s153, 1
    %s155 = scalar_select %p152, %s153, %s154
    %p158 = pneg %p152
    %p159 = scmp.eq.s32.totalorder %s12, 1
    %p160 = por %p158, %p159
    %p161 = scmp.ne.s32.totalorder %s153, %s156
    %p162 = scmp.eq.s32.totalorder %s12, 0
    %p163 = por %p161, %p162
    %p164 = scmp.ne.s32.totalorder %s153, %s156
    %p165 = scmp.eq.s32.totalorder %s17, 1
    %p166 = por %p164, %p165
    %p167 = scmp.ne.s32.totalorder %s156, %s157
    %p168 = scmp.eq.s32.totalorder %s17, 0
    %p169 = por %p167, %p168
    %p170 = scmp.ne.s32.totalorder %s156, %s157
    %p171 = scmp.eq.s32.totalorder %s18, 1
    %p172 = por %p170, %p171
    %p174 = scmp.ne.s32.totalorder %s157, %s173
    %p175 = scmp.eq.s32.totalorder %s18, 0
    %p176 = por %p174, %p175
    %p177 = scmp.le.s32.totalorder 1, %s12
    %p178 = scmp.lt.s32.totalorder %s12, 3
    %p179 = pnand %p177, %p178
    %p180 = pneg %p179
    // Predicated region
    $region9: #{tpu_custom_call.1} parent=5 // pred_check
      _
    $region10: #{tpu_custom_call.1} parent=5 // pred_check_branch
      %182 = sbr.rel (%p179) target = $region12
    $region11: #{tpu_custom_call.1} parent=5 // pred_region
      %s183 = ssub.s32 %s12, 1
      // Predicated region
      $region13: #{tpu_custom_call.1} parent=11 // pred_check
        %p184 = pneg %p59
      $region14: #{tpu_custom_call.1} parent=11 // pred_check_branch
        %186 = sbr.rel (%p184) target = $region16
      $region15: #{tpu_custom_call.1} parent=11 // pred_region
        _
      $region16: #{tpu_custom_call.1} parent=11 // pred_fallthru
        _
      // Predicated region
      $region17: #{tpu_custom_call.1} parent=11 // pred_check
        %p187 = pneg %p80
      $region18: #{tpu_custom_call.1} parent=11 // pred_check_branch
        %189 = sbr.rel (%p187) target = $region20
      $region19: #{tpu_custom_call.1} parent=11 // pred_region
        _
      $region20: #{tpu_custom_call.1} parent=11 // pred_fallthru
        _
      // Predicated region
      $region21: #{tpu_custom_call.1} parent=11 // pred_check
        %p190 = pneg %p101
      $region22: #{tpu_custom_call.1} parent=11 // pred_check_branch
        %192 = sbr.rel (%p190) target = $region24
      $region23: #{tpu_custom_call.1} parent=11 // pred_region
        _
      $region24: #{tpu_custom_call.1} parent=11 // pred_fallthru
        _
      // Predicated region
      $region25: #{tpu_custom_call.1} parent=11 // pred_check
        %p193 = pneg %p122
      $region26: #{tpu_custom_call.1} parent=11 // pred_check_branch
        %195 = sbr.rel (%p193) target = $region28
      $region27: #{tpu_custom_call.1} parent=11 // pred_region
        _
      $region28: #{tpu_custom_call.1} parent=11 // pred_fallthru
        _
      // Predicated region
      $region29: #{tpu_custom_call.1} parent=11 // pred_check
        %p196 = pneg %p143
      $region30: #{tpu_custom_call.1} parent=11 // pred_check_branch
        %198 = sbr.rel (%p196) target = $region32
      $region31: #{tpu_custom_call.1} parent=11 // pred_region
        _
      $region32: #{tpu_custom_call.1} parent=11 // pred_fallthru
        _
    $region12: #{tpu_custom_call.1} parent=5 // pred_fallthru
      _
    %p199 = scmp.lt.s32.totalorder %s12, 2
    // Predicated region
    $region33: #{tpu_custom_call.1} parent=5 // pred_check
      %p200 = pneg %p199
    $region34: #{tpu_custom_call.1} parent=5 // pred_check_branch
      %202 = sbr.rel (%p200) target = $region36
    $region35: #{tpu_custom_call.1} parent=5 // pred_region
      // Predicated region
      $region37: #{tpu_custom_call.1} parent=35 // pred_check
        %p203 = pneg %p32
      $region38: #{tpu_custom_call.1} parent=35 // pred_check_branch
        %205 = sbr.rel (%p203) target = $region40
      $region39: #{tpu_custom_call.1} parent=35 // pred_region
        %s206 = smul.u32 4, %s12
        %p207 = scmp.lt.s32.totalorder %s206, 7
        %s208 = scalar_select %p207, %s206, 7
        %s209 = smul.addr %s208, 8
        %s210 = scalar_lea.vmem %s0, %s209
        %s211 = smul.u32 4, %s12
      $region40: #{tpu_custom_call.1} parent=35 // pred_fallthru
        _
    $region36: #{tpu_custom_call.1} parent=5 // pred_fallthru
      _
    %p212 = scmp.le.s32.totalorder 1, %s12
    %p213 = scmp.lt.s32.totalorder %s12, 3
    %p214 = pnand %p212, %p213
    %p215 = pneg %p214
    // Predicated region
    $region41: #{tpu_custom_call.1} parent=5 // pred_check
      _
    $region42: #{tpu_custom_call.1} parent=5 // pred_check_branch
      %217 = sbr.rel (%p214) target = $region44
    $region43: #{tpu_custom_call.1} parent=5 // pred_region
      %s218 = ssub.s32 %s12, 1
      %s219 = smul.u32 4, %s17
      %p220 = scmp.lt.s32.totalorder %s219, 7
      %s221 = scalar_select %p220, %s219, 7
      %s222 = smul.addr %s221, 8
      %s223 = scalar_lea.vmem %s0, %s222
      %p224 = pneg %p38
      %p225 = pneg %p35
      %p226 = pneg %p59
      %p227 = pneg %p56
      %p228 = pneg %p80
      %p229 = pneg %p77
      %p230 = pneg %p101
      %p231 = pneg %p98
      %p232 = pneg %p122
      %p233 = pneg %p119
      %p234 = pneg %p143
      %p235 = pneg %p140
      %p236 = pneg %p169
      %p237 = pneg %p166
      %s238 = smul.u32 4, %s17
      %p239 = scmp.lt.s32.totalorder %s238, 7
      %s240 = scalar_select %p239, %s238, 7
      %s241 = smul.addr %s240, 8
      %s242 = scalar_lea.vmem %s6, %s241
      %s243 = smul.u32 4, %s17
      %p244 = scmp.lt.s32.totalorder %s243, 7
      %s245 = scalar_select %p244, %s243, 7
      %s246 = smul.addr %s245, 8
      %s247 = scalar_lea.vmem %s0, %s246
      %s248 = smul.u32 4, %s17
      %s249 = smul.u32 4, %s17
      %p250 = scmp.lt.s32.totalorder %s249, 7
      %s251 = scalar_select %p250, %s249, 7
      %s252 = smul.addr %s251, 8
      %s253 = scalar_lea.vmem %s6, %s252
      %s254 = smul.u32 4, %s17
      %v256 = vld [vmem:[%s247] sm:$0xff]
      %v257 = vld [vmem:[%s247 + $0x8] sm:$0xff]
      %v258 = vld [vmem:[%s247 + $0x10] sm:$0xff]
      %v259 = vld [vmem:[%s247 + $0x18] sm:$0xff]
      %v260 = vld [vmem:[%s5] sm:$0x7f]
      %v261 = vpack.c.bf16 %v257, %v256
      %v262 = vpack.c.bf16 %v259, %v258
      %v263 = vld [vmem:[%s1] sm:$0xf]
      %v264 = vld [vmem:[%s1 + $0x4] sm:$0xf]
      %v265 = vld [vmem:[%s1 + $0x8] sm:$0xf]
      %v266 = vld [vmem:[%s1 + $0xc] sm:$0xf]
      %v271 = vunpack.c.l.b16 %v263
      %v272 = vunpack.c.l.b16 %v264
      %v273 = vunpack.c.l.b16 %v265
      %v274 = vunpack.c.l.b16 %v266
      %v275 = vpack.c.b16 %v272, %v271
      %v276 = vpack.c.b16 %v274, %v273
      %vm279 = vcmask 261120
      %v281 = vsel %vm279, %v261, 0
      %v284 = vsel %vm279, %v262, 0
      %286 = vmatprep.subr.bf16.mxu0 0
      %287 = vmatpush1.bf16.msra.mxu0 %v275
      %288 = vmatprep.subr.bf16.mxu0 0
      %289 = vmatpush1.bf16.msra.mxu0 %v276
      %290 = vmatprep.subr.bf16.mxu0 0
      %291 = vmatpush1.bf16.msra.mxu0 0
      %292 = vmatprep.subr.bf16.mxu0 0
      %293 = vmatpush1.bf16.msra.mxu0 0
      %294 = vmatprep.subr.bf16.mxu0 0
      %295 = vmatpush1.bf16.msra.mxu0 0
      %296 = vmatprep.subr.bf16.mxu0 0
      %297 = vmatpush1.bf16.msra.mxu0 0
      %298 = vmatprep.subr.bf16.mxu0 0
      %299 = vmatpush1.bf16.msra.mxu0 0
      %300 = vmatprep.subr.bf16.mxu0 0
      %301 = vmatpush1.bf16.msra.mxu0 0
      %302 = vmatprep.subr.bf16.mxu0 0
      %303 = vmatpush1.bf16.msra.mxu0 0
      %304 = vmatprep.subr.bf16.mxu0 0
      %305 = vmatpush1.bf16.msra.mxu0 0
      %306 = vmatprep.subr.bf16.mxu0 0
      %307 = vmatpush1.bf16.msra.mxu0 0
      %308 = vmatprep.subr.bf16.mxu0 0
      %309 = vmatpush1.bf16.msra.mxu0 0
      %310 = vmatprep.subr.bf16.mxu0 0
      %311 = vmatpush1.bf16.msra.mxu0 0
      %312 = vmatprep.subr.bf16.mxu0 0
      %313 = vmatpush1.bf16.msra.mxu0 0
      %314 = vmatprep.subr.bf16.mxu0 0
      %315 = vmatpush1.bf16.msra.mxu0 0
      %316 = vmatprep.subr.bf16.mxu0 0
      %317 = vmatpush1.bf16.msra.mxu0 0
      %318 = vmatprep.mubr.bf16.mxu0 0
      %319 = vmatmul.mubr.bf16.gmra.mrb[0].mxu0 %v281
      %v320 = vpop.f32.mrb[0].mxu0
      %v321 = vadd.f32 0.0, %v320
      %v322 = vpop.f32.mrb[0].mxu0
      %v323 = vpop.f32.mrb[0].mxu0
      %v324 = vadd.f32 0.0, %v323
      %v325 = vpop.f32.mrb[0].mxu0
      %326 = vmatprep.mubr.bf16.mxu0 0
      %327 = vmatmul.mubr.bf16.gmra.mrb[0].mxu0 %v284
      %v328 = vpop.f32.mrb[0].mxu0
      %v329 = vadd.f32 0.0, %v328
      %v330 = vpop.f32.mrb[0].mxu0
      %v331 = vpop.f32.mrb[0].mxu0
      %v332 = vadd.f32 0.0, %v331
      %v333 = vpop.f32.mrb[0].mxu0
      %334 = vdwg.mxu0
      %v335 = vpack.c.bf16 %v324, %v321
      %v336 = vpack.c.bf16 %v332, %v329
      %v339 = vunpack.c.l.b16 %v335
      %v340 = vunpack.c.h.b16 %v335
      %v341 = vunpack.c.l.b16 %v336
      %v342 = vunpack.c.h.b16 %v336
      %v343 = vpack.c.b16 %v339, %v339
      %v344 = vpack.c.b16 %v340, %v340
      %v345 = vpack.c.b16 %v341, %v341
      %v346 = vpack.c.b16 %v342, %v342
      %347 = vrot.lane.b32.xlu0 %v343, 120
      %v348 = vpop.permute.xlu0 %347
      %349 = vrot.lane.b32.xlu0 %v344, 120
      %v350 = vpop.permute.xlu0 %349
      %351 = vrot.lane.b32.xlu0 %v345, 120
      %v352 = vpop.permute.xlu0 %351
      %353 = vrot.lane.b32.xlu0 %v346, 120
      %v354 = vpop.permute.xlu0 %353
      %355 = vrot.lane.b32.xlu0 %v343, 112
      %v356 = vpop.permute.xlu0 %355
      %357 = vrot.lane.b32.xlu0 %v344, 112
      %v358 = vpop.permute.xlu0 %357
      %359 = vrot.lane.b32.xlu0 %v345, 112
      %v360 = vpop.permute.xlu0 %359
      %361 = vrot.lane.b32.xlu0 %v346, 112
      %v362 = vpop.permute.xlu0 %361
      %363 = vrot.lane.b32.xlu0 %v343, 104
      %v364 = vpop.permute.xlu0 %363
      %365 = vrot.lane.b32.xlu0 %v344, 104
      %v366 = vpop.permute.xlu0 %365
      %367 = vrot.lane.b32.xlu0 %v345, 104
      %v368 = vpop.permute.xlu0 %367
      %369 = vrot.lane.b32.xlu0 %v346, 104
      %v370 = vpop.permute.xlu0 %369
      %371 = vrot.lane.b32.xlu0 %v343, 96
      %v372 = vpop.permute.xlu0 %371
      %vm373 = vcmask 64512
      %v375 = vsel %vm373, %v343, 0
      %v378 = vsel %vm373, %v372, 0
      %380 = vmatprep.subr.bf16.mxu0 0
      %381 = vmatpush1.bf16.xpose.msra.mxu0 %v378
      %382 = vmatprep.subr.bf16.mxu0 0
      %383 = vmatpush1.bf16.xpose.msra.mxu0 0
      %384 = vmatprep.subr.bf16.mxu0 0
      %385 = vmatpush1.bf16.xpose.msra.mxu0 0
      %386 = vmatprep.subr.bf16.mxu0 0
      %387 = vmatpush1.bf16.xpose.msra.mxu0 0
      %388 = vmatprep.subr.bf16.mxu0 0
      %389 = vmatpush1.bf16.xpose.msra.mxu0 0
      %390 = vmatprep.subr.bf16.mxu0 0
      %391 = vmatpush1.bf16.xpose.msra.mxu0 0
      %392 = vmatprep.subr.bf16.mxu0 0
      %393 = vmatpush1.bf16.xpose.msra.mxu0 0
      %394 = vmatprep.subr.bf16.mxu0 0
      %395 = vmatpush1.bf16.xpose.msra.mxu0 0
      %396 = vmatprep.subr.bf16.mxu0 0
      %397 = vmatpush1.bf16.xpose.msra.mxu0 0
      %398 = vmatprep.subr.bf16.mxu0 0
      %399 = vmatpush1.bf16.xpose.msra.mxu0 0
      %400 = vmatprep.subr.bf16.mxu0 0
      %401 = vmatpush1.bf16.xpose.msra.mxu0 0
      %402 = vmatprep.subr.bf16.mxu0 0
      %403 = vmatpush1.bf16.xpose.msra.mxu0 0
      %404 = vmatprep.subr.bf16.mxu0 0
      %405 = vmatpush1.bf16.xpose.msra.mxu0 0
      %406 = vmatprep.subr.bf16.mxu0 0
      %407 = vmatpush1.bf16.xpose.msra.mxu0 0
      %408 = vmatprep.subr.bf16.mxu0 0
      %409 = vmatpush1.bf16.xpose.msra.mxu0 0
      %410 = vmatprep.subr.bf16.mxu0 0
      %411 = vmatpush1.bf16.xpose.msra.mxu0 0
      %412 = vmatprep.mubr.bf16.mxu0 0
      %413 = vmatmul.mubr.bf16.gmra.mrb[0].mxu0 %v375
      %v414 = vpop.f32.mrb[0].mxu0
      %v415 = vadd.f32 0.0, %v414
      %v416 = vpop.f32.mrb[0].mxu0
      %v417 = vpop.f32.mrb[0].mxu0
      %v418 = vpop.f32.mrb[0].mxu0
      %419 = vdwg.mxu0
      %420 = vrot.lane.b32.xlu0 %v344, 96
      %v421 = vpop.permute.xlu0 %420
      %v423 = vsel %vm373, %v344, 0
      %v426 = vsel %vm373, %v421, 0
      %428 = vmatprep.subr.bf16.mxu0 0
      %429 = vmatpush1.bf16.xpose.msra.mxu0 %v426
      %430 = vmatprep.subr.bf16.mxu0 0
      %431 = vmatpush1.bf16.xpose.msra.mxu0 0
      %432 = vmatprep.subr.bf16.mxu0 0
      %433 = vmatpush1.bf16.xpose.msra.mxu0 0
      %434 = vmatprep.subr.bf16.mxu0 0
      %435 = vmatpush1.bf16.xpose.msra.mxu0 0
      %436 = vmatprep.subr.bf16.mxu0 0
      %437 = vmatpush1.bf16.xpose.msra.mxu0 0
      %438 = vmatprep.subr.bf16.mxu0 0
      %439 = vmatpush1.bf16.xpose.msra.mxu0 0
      %440 = vmatprep.subr.bf16.mxu0 0
      %441 = vmatpush1.bf16.xpose.msra.mxu0 0
      %442 = vmatprep.subr.bf16.mxu0 0
      %443 = vmatpush1.bf16.xpose.msra.mxu0 0
      %444 = vmatprep.subr.bf16.mxu0 0
      %445 = vmatpush1.bf16.xpose.msra.mxu0 0
      %446 = vmatprep.subr.bf16.mxu0 0
      %447 = vmatpush1.bf16.xpose.msra.mxu0 0
      %448 = vmatprep.subr.bf16.mxu0 0
      %449 = vmatpush1.bf16.xpose.msra.mxu0 0
      %450 = vmatprep.subr.bf16.mxu0 0
      %451 = vmatpush1.bf16.xpose.msra.mxu0 0
      %452 = vmatprep.subr.bf16.mxu0 0
      %453 = vmatpush1.bf16.xpose.msra.mxu0 0
      %454 = vmatprep.subr.bf16.mxu0 0
      %455 = vmatpush1.bf16.xpose.msra.mxu0 0
      %456 = vmatprep.subr.bf16.mxu0 0
      %457 = vmatpush1.bf16.xpose.msra.mxu0 0
      %458 = vmatprep.subr.bf16.mxu0 0
      %459 = vmatpush1.bf16.xpose.msra.mxu0 0
      %460 = vmatprep.mubr.bf16.mxu0 0
      %461 = vmatmul.mubr.bf16.gmra.mrb[0].mxu0 %v423
      %v462 = vpop.f32.mrb[0].mxu0
      %v463 = vadd.f32 0.0, %v462
      %v464 = vpop.f32.mrb[0].mxu0
      %v465 = vpop.f32.mrb[0].mxu0
      %v466 = vpop.f32.mrb[0].mxu0
      %467 = vdwg.mxu0
      %468 = vrot.lane.b32.xlu0 %v345, 96
      %v469 = vpop.permute.xlu0 %468
      %v471 = vsel %vm373, %v345, 0
      %v474 = vsel %vm373, %v469, 0
      %476 = vmatprep.subr.bf16.mxu0 0
      %477 = vmatpush1.bf16.xpose.msra.mxu0 %v474
      %478 = vmatprep.subr.bf16.mxu0 0
      %479 = vmatpush1.bf16.xpose.msra.mxu0 0
      %480 = vmatprep.subr.bf16.mxu0 0
      %481 = vmatpush1.bf16.xpose.msra.mxu0 0
      %482 = vmatprep.subr.bf16.mxu0 0
      %483 = vmatpush1.bf16.xpose.msra.mxu0 0
      %484 = vmatprep.subr.bf16.mxu0 0
      %485 = vmatpush1.bf16.xpose.msra.mxu0 0
      %486 = vmatprep.subr.bf16.mxu0 0
      %487 = vmatpush1.bf16.xpose.msra.mxu0 0
      %488 = vmatprep.subr.bf16.mxu0 0
      %489 = vmatpush1.bf16.xpose.msra.mxu0 0
      %490 = vmatprep.subr.bf16.mxu0 0
      %491 = vmatpush1.bf16.xpose.msra.mxu0 0
      %492 = vmatprep.subr.bf16.mxu0 0
      %493 = vmatpush1.bf16.xpose.msra.mxu0 0
      %494 = vmatprep.subr.bf16.mxu0 0
      %495 = vmatpush1.bf16.xpose.msra.mxu0 0
      %496 = vmatprep.subr.bf16.mxu0 0
      %497 = vmatpush1.bf16.xpose.msra.mxu0 0
      %498 = vmatprep.subr.bf16.mxu0 0
      %499 = vmatpush1.bf16.xpose.msra.mxu0 0
      %500 = vmatprep.subr.bf16.mxu0 0
      %501 = vmatpush1.bf16.xpose.msra.mxu0 0
      %502 = vmatprep.subr.bf16.mxu0 0
      %503 = vmatpush1.bf16.xpose.msra.mxu0 0
      %504 = vmatprep.subr.bf16.mxu0 0
      %505 = vmatpush1.bf16.xpose.msra.mxu0 0
      %506 = vmatprep.subr.bf16.mxu0 0
      %507 = vmatpush1.bf16.xpose.msra.mxu0 0
      %508 = vmatprep.mubr.bf16.mxu0 0
      %509 = vmatmul.mubr.bf16.gmra.mrb[0].mxu0 %v471
      %v510 = vpop.f32.mrb[0].mxu0
      %v511 = vadd.f32 0.0, %v510
      %v512 = vpop.f32.mrb[0].mxu0
      %v513 = vpop.f32.mrb[0].mxu0
      %v514 = vpop.f32.mrb[0].mxu0
      %515 = vdwg.mxu0
      %516 = vrot.lane.b32.xlu0 %v346, 96
      %v517 = vpop.permute.xlu0 %516
      %v519 = vsel %vm373, %v346, 0
      %v522 = vsel %vm373, %v517, 0
      %524 = vmatprep.subr.bf16.mxu0 0
      %525 = vmatpush1.bf16.xpose.msra.mxu0 %v522
      %526 = vmatprep.subr.bf16.mxu0 0
      %527 = vmatpush1.bf16.xpose.msra.mxu0 0
      %528 = vmatprep.subr.bf16.mxu0 0
      %529 = vmatpush1.bf16.xpose.msra.mxu0 0
      %530 = vmatprep.subr.bf16.mxu0 0
      %531 = vmatpush1.bf16.xpose.msra.mxu0 0
      %532 = vmatprep.subr.bf16.mxu0 0
      %533 = vmatpush1.bf16.xpose.msra.mxu0 0
      %534 = vmatprep.subr.bf16.mxu0 0
      %535 = vmatpush1.bf16.xpose.msra.mxu0 0
      %536 = vmatprep.subr.bf16.mxu0 0
      %537 = vmatpush1.bf16.xpose.msra.mxu0 0
      %538 = vmatprep.subr.bf16.mxu0 0
      %539 = vmatpush1.bf16.xpose.msra.mxu0 0
      %540 = vmatprep.subr.bf16.mxu0 0
      %541 = vmatpush1.bf16.xpose.msra.mxu0 0
      %542 = vmatprep.subr.bf16.mxu0 0
      %543 = vmatpush1.bf16.xpose.msra.mxu0 0
      %544 = vmatprep.subr.bf16.mxu0 0
      %545 = vmatpush1.bf16.xpose.msra.mxu0 0
      %546 = vmatprep.subr.bf16.mxu0 0
      %547 = vmatpush1.bf16.xpose.msra.mxu0 0
      %548 = vmatprep.subr.bf16.mxu0 0
      %549 = vmatpush1.bf16.xpose.msra.mxu0 0
      %550 = vmatprep.subr.bf16.mxu0 0
      %551 = vmatpush1.bf16.xpose.msra.mxu0 0
      %552 = vmatprep.subr.bf16.mxu0 0
      %553 = vmatpush1.bf16.xpose.msra.mxu0 0
      %554 = vmatprep.subr.bf16.mxu0 0
      %555 = vmatpush1.bf16.xpose.msra.mxu0 0
      %556 = vmatprep.mubr.bf16.mxu0 0
      %557 = vmatmul.mubr.bf16.gmra.mrb[0].mxu0 %v519
      %v558 = vpop.f32.mrb[0].mxu0
      %v559 = vadd.f32 0.0, %v558
      %v560 = vpop.f32.mrb[0].mxu0
      %v561 = vpop.f32.mrb[0].mxu0
      %v562 = vpop.f32.mrb[0].mxu0
      %563 = vdwg.mxu0
      %v564 = vunpack.c.l.b16 %v348
      %v565 = vpack.c.b16 %v564, %v564
      %566 = vrot.lane.b32.xlu0 %v565, 96
      %v567 = vpop.permute.xlu0 %566
      %v569 = vsel %vm373, %v348, 0
      %v572 = vsel %vm373, %v567, 0
      %574 = vmatprep.subr.bf16.mxu0 0
      %575 = vmatpush1.bf16.xpose.msra.mxu0 %v572
      %576 = vmatprep.subr.bf16.mxu0 0
      %577 = vmatpush1.bf16.xpose.msra.mxu0 0
      %578 = vmatprep.subr.bf16.mxu0 0
      %579 = vmatpush1.bf16.xpose.msra.mxu0 0
      %580 = vmatprep.subr.bf16.mxu0 0
      %581 = vmatpush1.bf16.xpose.msra.mxu0 0
      %582 = vmatprep.subr.bf16.mxu0 0
      %583 = vmatpush1.bf16.xpose.msra.mxu0 0
      %584 = vmatprep.subr.bf16.mxu0 0
      %585 = vmatpush1.bf16.xpose.msra.mxu0 0
      %586 = vmatprep.subr.bf16.mxu0 0
      %587 = vmatpush1.bf16.xpose.msra.mxu0 0
      %588 = vmatprep.subr.bf16.mxu0 0
      %589 = vmatpush1.bf16.xpose.msra.mxu0 0
      %590 = vmatprep.subr.bf16.mxu0 0
      %591 = vmatpush1.bf16.xpose.msra.mxu0 0
      %592 = vmatprep.subr.bf16.mxu0 0
      %593 = vmatpush1.bf16.xpose.msra.mxu0 0
      %594 = vmatprep.subr.bf16.mxu0 0
      %595 = vmatpush1.bf16.xpose.msra.mxu0 0
      %596 = vmatprep.subr.bf16.mxu0 0
      %597 = vmatpush1.bf16.xpose.msra.mxu0 0
      %598 = vmatprep.subr.bf16.mxu0 0
      %599 = vmatpush1.bf16.xpose.msra.mxu0 0
      %600 = vmatprep.subr.bf16.mxu0 0
      %601 = vmatpush1.bf16.xpose.msra.mxu0 0
      %602 = vmatprep.subr.bf16.mxu0 0
      %603 = vmatpush1.bf16.xpose.msra.mxu0 0
      %604 = vmatprep.subr.bf16.mxu0 0
      %605 = vmatpush1.bf16.xpose.msra.mxu0 0
      %606 = vmatprep.mubr.bf16.mxu0 0
      %607 = vmatmul.mubr.bf16.gmra.mrb[0].mxu0 %v569
      %v608 = vpop.f32.mrb[0].mxu0
      %v609 = vadd.f32 0.0, %v608
      %v610 = vpop.f32.mrb[0].mxu0
      %v611 = vpop.f32.mrb[0].mxu0
      %v612 = vpop.f32.mrb[0].mxu0
      %613 = vdwg.mxu0
      %v614 = vunpack.c.l.b16 %v350
      %v615 = vpack.c.b16 %v614, %v614
      %616 = vrot.lane.b32.xlu0 %v615, 96
      %v617 = vpop.permute.xlu0 %616
      %v619 = vsel %vm373, %v350, 0
      %v622 = vsel %vm373, %v617, 0
      %624 = vmatprep.subr.bf16.mxu0 0
      %625 = vmatpush1.bf16.xpose.msra.mxu0 %v622
      %626 = vmatprep.subr.bf16.mxu0 0
      %627 = vmatpush1.bf16.xpose.msra.mxu0 0
      %628 = vmatprep.subr.bf16.mxu0 0
      %629 = vmatpush1.bf16.xpose.msra.mxu0 0
      %630 = vmatprep.subr.bf16.mxu0 0
      %631 = vmatpush1.bf16.xpose.msra.mxu0 0
      %632 = vmatprep.subr.bf16.mxu0 0
      %633 = vmatpush1.bf16.xpose.msra.mxu0 0
      %634 = vmatprep.subr.bf16.mxu0 0
      %635 = vmatpush1.bf16.xpose.msra.mxu0 0
      %636 = vmatprep.subr.bf16.mxu0 0
      %637 = vmatpush1.bf16.xpose.msra.mxu0 0
      %638 = vmatprep.subr.bf16.mxu0 0
      %639 = vmatpush1.bf16.xpose.msra.mxu0 0
      %640 = vmatprep.subr.bf16.mxu0 0
      %641 = vmatpush1.bf16.xpose.msra.mxu0 0
      %642 = vmatprep.subr.bf16.mxu0 0
      %643 = vmatpush1.bf16.xpose.msra.mxu0 0
      %644 = vmatprep.subr.bf16.mxu0 0
      %645 = vmatpush1.bf16.xpose.msra.mxu0 0
      %646 = vmatprep.subr.bf16.mxu0 0
      %647 = vmatpush1.bf16.xpose.msra.mxu0 0
      %648 = vmatprep.subr.bf16.mxu0 0
      %649 = vmatpush1.bf16.xpose.msra.mxu0 0
      %650 = vmatprep.subr.bf16.mxu0 0
      %651 = vmatpush1.bf16.xpose.msra.mxu0 0
      %652 = vmatprep.subr.bf16.mxu0 0
      %653 = vmatpush1.bf16.xpose.msra.mxu0 0
      %654 = vmatprep.subr.bf16.mxu0 0
      %655 = vmatpush1.bf16.xpose.msra.mxu0 0
      %656 = vmatprep.mubr.bf16.mxu0 0
      %657 = vmatmul.mubr.bf16.gmra.mrb[0].mxu0 %v619
      %v658 = vpop.f32.mrb[0].mxu0
      %v659 = vadd.f32 0.0, %v658
      %v660 = vpop.f32.mrb[0].mxu0
      %v661 = vpop.f32.mrb[0].mxu0
      %v662 = vpop.f32.mrb[0].mxu0
      %663 = vdwg.mxu0
      %v664 = vunpack.c.l.b16 %v352
      %v665 = vpack.c.b16 %v664, %v664
      %666 = vrot.lane.b32.xlu0 %v665, 96
      %v667 = vpop.permute.xlu0 %666
      %v669 = vsel %vm373, %v352, 0
      %v672 = vsel %vm373, %v667, 0
      %674 = vmatprep.subr.bf16.mxu0 0
      %675 = vmatpush1.bf16.xpose.msra.mxu0 %v672
      %676 = vmatprep.subr.bf16.mxu0 0
      %677 = vmatpush1.bf16.xpose.msra.mxu0 0
      %678 = vmatprep.subr.bf16.mxu0 0
      %679 = vmatpush1.bf16.xpose.msra.mxu0 0
      %680 = vmatprep.subr.bf16.mxu0 0
      %681 = vmatpush1.bf16.xpose.msra.mxu0 0
      %682 = vmatprep.subr.bf16.mxu0 0
      %683 = vmatpush1.bf16.xpose.msra.mxu0 0
      %684 = vmatprep.subr.bf16.mxu0 0
      %685 = vmatpush1.bf16.xpose.msra.mxu0 0
      %686 = vmatprep.subr.bf16.mxu0 0
      %687 = vmatpush1.bf16.xpose.msra.mxu0 0
      %688 = vmatprep.subr.bf16.mxu0 0
      %689 = vmatpush1.bf16.xpose.msra.mxu0 0
      %690 = vmatprep.subr.bf16.mxu0 0
      %691 = vmatpush1.bf16.xpose.msra.mxu0 0
      %692 = vmatprep.subr.bf16.mxu0 0
      %693 = vmatpush1.bf16.xpose.msra.mxu0 0
      %694 = vmatprep.subr.bf16.mxu0 0
      %695 = vmatpush1.bf16.xpose.msra.mxu0 0
      %696 = vmatprep.subr.bf16.mxu0 0
      %697 = vmatpush1.bf16.xpose.msra.mxu0 0
      %698 = vmatprep.subr.bf16.mxu0 0
      %699 = vmatpush1.bf16.xpose.msra.mxu0 0
      %700 = vmatprep.subr.bf16.mxu0 0
      %701 = vmatpush1.bf16.xpose.msra.mxu0 0
      %702 = vmatprep.subr.bf16.mxu0 0
      %703 = vmatpush1.bf16.xpose.msra.mxu0 0
      %704 = vmatprep.subr.bf16.mxu0 0
      %705 = vmatpush1.bf16.xpose.msra.mxu0 0
      %706 = vmatprep.mubr.bf16.mxu0 0
      %707 = vmatmul.mubr.bf16.gmra.mrb[0].mxu0 %v669
      %v708 = vpop.f32.mrb[0].mxu0
      %v709 = vadd.f32 0.0, %v708
      %v710 = vpop.f32.mrb[0].mxu0
      %v711 = vpop.f32.mrb[0].mxu0
      %v712 = vpop.f32.mrb[0].mxu0
      %713 = vdwg.mxu0
      %v714 = vunpack.c.l.b16 %v354
      %v715 = vpack.c.b16 %v714, %v714
      %716 = vrot.lane.b32.xlu0 %v715, 96
      %v717 = vpop.permute.xlu0 %716
      %v719 = vsel %vm373, %v354, 0
      %v722 = vsel %vm373, %v717, 0
      %724 = vmatprep.subr.bf16.mxu0 0
      %725 = vmatpush1.bf16.xpose.msra.mxu0 %v722
      %726 = vmatprep.subr.bf16.mxu0 0
      %727 = vmatpush1.bf16.xpose.msra.mxu0 0
      %728 = vmatprep.subr.bf16.mxu0 0
      %729 = vmatpush1.bf16.xpose.msra.mxu0 0
      %730 = vmatprep.subr.bf16.mxu0 0
      %731 = vmatpush1.bf16.xpose.msra.mxu0 0
      %732 = vmatprep.subr.bf16.mxu0 0
      %733 = vmatpush1.bf16.xpose.msra.mxu0 0
      %734 = vmatprep.subr.bf16.mxu0 0
      %735 = vmatpush1.bf16.xpose.msra.mxu0 0
      %736 = vmatprep.subr.bf16.mxu0 0
      %737 = vmatpush1.bf16.xpose.msra.mxu0 0
      %738 = vmatprep.subr.bf16.mxu0 0
      %739 = vmatpush1.bf16.xpose.msra.mxu0 0
      %740 = vmatprep.subr.bf16.mxu0 0
      %741 = vmatpush1.bf16.xpose.msra.mxu0 0
      %742 = vmatprep.subr.bf16.mxu0 0
      %743 = vmatpush1.bf16.xpose.msra.mxu0 0
      %744 = vmatprep.subr.bf16.mxu0 0
      %745 = vmatpush1.bf16.xpose.msra.mxu0 0
      %746 = vmatprep.subr.bf16.mxu0 0
      %747 = vmatpush1.bf16.xpose.msra.mxu0 0
      %748 = vmatprep.subr.bf16.mxu0 0
      %749 = vmatpush1.bf16.xpose.msra.mxu0 0
      %750 = vmatprep.subr.bf16.mxu0 0
      %751 = vmatpush1.bf16.xpose.msra.mxu0 0
      %752 = vmatprep.subr.bf16.mxu0 0
      %753 = vmatpush1.bf16.xpose.msra.mxu0 0
      %754 = vmatprep.subr.bf16.mxu0 0
      %755 = vmatpush1.bf16.xpose.msra.mxu0 0
      %756 = vmatprep.mubr.bf16.mxu0 0
      %757 = vmatmul.mubr.bf16.gmra.mrb[0].mxu0 %v719
      %v758 = vpop.f32.mrb[0].mxu0
      %v759 = vadd.f32 0.0, %v758
      %v760 = vpop.f32.mrb[0].mxu0
      %v761 = vpop.f32.mrb[0].mxu0
      %v762 = vpop.f32.mrb[0].mxu0
      %763 = vdwg.mxu0
      %v764 = vunpack.c.l.b16 %v356
      %v765 = vpack.c.b16 %v764, %v764
      %766 = vrot.lane.b32.xlu0 %v765, 96
      %v767 = vpop.permute.xlu0 %766
      %v769 = vsel %vm373, %v356, 0
      %v772 = vsel %vm373, %v767, 0
      %774 = vmatprep.subr.bf16.mxu0 0
      %775 = vmatpush1.bf16.xpose.msra.mxu0 %v772
      %776 = vmatprep.subr.bf16.mxu0 0
      %777 = vmatpush1.bf16.xpose.msra.mxu0 0
      %778 = vmatprep.subr.bf16.mxu0 0
      %779 = vmatpush1.bf16.xpose.msra.mxu0 0
      %780 = vmatprep.subr.bf16.mxu0 0
      %781 = vmatpush1.bf16.xpose.msra.mxu0 0
      %782 = vmatprep.subr.bf16.mxu0 0
      %783 = vmatpush1.bf16.xpose.msra.mxu0 0
      %784 = vmatprep.subr.bf16.mxu0 0
      %785 = vmatpush1.bf16.xpose.msra.mxu0 0
      %786 = vmatprep.subr.bf16.mxu0 0
      %787 = vmatpush1.bf16.xpose.msra.mxu0 0
      %788 = vmatprep.subr.bf16.mxu0 0
      %789 = vmatpush1.bf16.xpose.msra.mxu0 0
      %790 = vmatprep.subr.bf16.mxu0 0
      %791 = vmatpush1.bf16.xpose.msra.mxu0 0
      %792 = vmatprep.subr.bf16.mxu0 0
      %793 = vmatpush1.bf16.xpose.msra.mxu0 0
      %794 = vmatprep.subr.bf16.mxu0 0
      %795 = vmatpush1.bf16.xpose.msra.mxu0 0
      %796 = vmatprep.subr.bf16.mxu0 0
      %797 = vmatpush1.bf16.xpose.msra.mxu0 0
      %798 = vmatprep.subr.bf16.mxu0 0
      %799 = vmatpush1.bf16.xpose.msra.mxu0 0
      %800 = vmatprep.subr.bf16.mxu0 0
      %801 = vmatpush1.bf16.xpose.msra.mxu0 0
      %802 = vmatprep.subr.bf16.mxu0 0
      %803 = vmatpush1.bf16.xpose.msra.mxu0 0
      %804 = vmatprep.subr.bf16.mxu0 0
      %805 = vmatpush1.bf16.xpose.msra.mxu0 0
      %806 = vmatprep.mubr.bf16.mxu0 0
      %807 = vmatmul.mubr.bf16.gmra.mrb[0].mxu0 %v769
      %v808 = vpop.f32.mrb[0].mxu0
      %v809 = vadd.f32 0.0, %v808
      %v810 = vpop.f32.mrb[0].mxu0
      %v811 = vpop.f32.mrb[0].mxu0
      %v812 = vpop.f32.mrb[0].mxu0
      %813 = vdwg.mxu0
      %v814 = vunpack.c.l.b16 %v358
      %v815 = vpack.c.b16 %v814, %v814
      %816 = vrot.lane.b32.xlu0 %v815, 96
      %v817 = vpop.permute.xlu0 %816
      %v819 = vsel %vm373, %v358, 0
      %v822 = vsel %vm373, %v817, 0
      %824 = vmatprep.subr.bf16.mxu0 0
      %825 = vmatpush1.bf16.xpose.msra.mxu0 %v822
      %826 = vmatprep.subr.bf16.mxu0 0
      %827 = vmatpush1.bf16.xpose.msra.mxu0 0
      %828 = vmatprep.subr.bf16.mxu0 0
      %829 = vmatpush1.bf16.xpose.msra.mxu0 0
      %830 = vmatprep.subr.bf16.mxu0 0
      %831 = vmatpush1.bf16.xpose.msra.mxu0 0
      %832 = vmatprep.subr.bf16.mxu0 0
      %833 = vmatpush1.bf16.xpose.msra.mxu0 0
      %834 = vmatprep.subr.bf16.mxu0 0
      %835 = vmatpush1.bf16.xpose.msra.mxu0 0
      %836 = vmatprep.subr.bf16.mxu0 0
      %837 = vmatpush1.bf16.xpose.msra.mxu0 0
      %838 = vmatprep.subr.bf16.mxu0 0
      %839 = vmatpush1.bf16.xpose.msra.mxu0 0
      %840 = vmatprep.subr.bf16.mxu0 0
      %841 = vmatpush1.bf16.xpose.msra.mxu0 0
      %842 = vmatprep.subr.bf16.mxu0 0
      %843 = vmatpush1.bf16.xpose.msra.mxu0 0
      %844 = vmatprep.subr.bf16.mxu0 0
      %845 = vmatpush1.bf16.xpose.msra.mxu0 0
      %846 = vmatprep.subr.bf16.mxu0 0
      %847 = vmatpush1.bf16.xpose.msra.mxu0 0
      %848 = vmatprep.subr.bf16.mxu0 0
      %849 = vmatpush1.bf16.xpose.msra.mxu0 0
      %850 = vmatprep.subr.bf16.mxu0 0
      %851 = vmatpush1.bf16.xpose.msra.mxu0 0
      %852 = vmatprep.subr.bf16.mxu0 0
      %853 = vmatpush1.bf16.xpose.msra.mxu0 0
      %854 = vmatprep.subr.bf16.mxu0 0
      %855 = vmatpush1.bf16.xpose.msra.mxu0 0
      %856 = vmatprep.mubr.bf16.mxu0 0
      %857 = vmatmul.mubr.bf16.gmra.mrb[0].mxu0 %v819
      %v858 = vpop.f32.mrb[0].mxu0
      %v859 = vadd.f32 0.0, %v858
      %v860 = vpop.f32.mrb[0].mxu0
      %v861 = vpop.f32.mrb[0].mxu0
      %v862 = vpop.f32.mrb[0].mxu0
      %863 = vdwg.mxu0
      %v864 = vunpack.c.l.b16 %v360
      %v865 = vpack.c.b16 %v864, %v864
      %866 = vrot.lane.b32.xlu0 %v865, 96
      %v867 = vpop.permute.xlu0 %866
      %v869 = vsel %vm373, %v360, 0
      %v872 = vsel %vm373, %v867, 0
      %874 = vmatprep.subr.bf16.mxu0 0
      %875 = vmatpush1.bf16.xpose.msra.mxu0 %v872
      %876 = vmatprep.subr.bf16.mxu0 0
      %877 = vmatpush1.bf16.xpose.msra.mxu0 0
      %878 = vmatprep.subr.bf16.mxu0 0
      %879 = vmatpush1.bf16.xpose.msra.mxu0 0
      %880 = vmatprep.subr.bf16.mxu0 0
      %881 = vmatpush1.bf16.xpose.msra.mxu0 0
      %882 = vmatprep.subr.bf16.mxu0 0
      %883 = vmatpush1.bf16.xpose.msra.mxu0 0
      %884 = vmatprep.subr.bf16.mxu0 0
      %885 = vmatpush1.bf16.xpose.msra.mxu0 0
      %886 = vmatprep.subr.bf16.mxu0 0
      %887 = vmatpush1.bf16.xpose.msra.mxu0 0
      %888 = vmatprep.subr.bf16.mxu0 0
      %889 = vmatpush1.bf16.xpose.msra.mxu0 0
      %890 = vmatprep.subr.bf16.mxu0 0
      %891 = vmatpush1.bf16.xpose.msra.mxu0 0
      %892 = vmatprep.subr.bf16.mxu0 0
      %893 = vmatpush1.bf16.xpose.msra.mxu0 0
      %894 = vmatprep.subr.bf16.mxu0 0
      %895 = vmatpush1.bf16.xpose.msra.mxu0 0
      %896 = vmatprep.subr.bf16.mxu0 0
      %897 = vmatpush1.bf16.xpose.msra.mxu0 0
      %898 = vmatprep.subr.bf16.mxu0 0
      %899 = vmatpush1.bf16.xpose.msra.mxu0 0
      %900 = vmatprep.subr.bf16.mxu0 0
      %901 = vmatpush1.bf16.xpose.msra.mxu0 0
      %902 = vmatprep.subr.bf16.mxu0 0
      %903 = vmatpush1.bf16.xpose.msra.mxu0 0
      %904 = vmatprep.subr.bf16.mxu0 0
      %905 = vmatpush1.bf16.xpose.msra.mxu0 0
      %906 = vmatprep.mubr.bf16.mxu0 0
      %907 = vmatmul.mubr.bf16.gmra.mrb[0].mxu0 %v869
      %v908 = vpop.f32.mrb[0].mxu0
      %v909 = vadd.f32 0.0, %v908
      %v910 = vpop.f32.mrb[0].mxu0
      %v911 = vpop.f32.mrb[0].mxu0
      %v912 = vpop.f32.mrb[0].mxu0
      %913 = vdwg.mxu0
      %v914 = vunpack.c.l.b16 %v362
      %v915 = vpack.c.b16 %v914, %v914
      %916 = vrot.lane.b32.xlu0 %v915, 96
      %v917 = vpop.permute.xlu0 %916
      %v919 = vsel %vm373, %v362, 0
      %v922 = vsel %vm373, %v917, 0
      %924 = vmatprep.subr.bf16.mxu0 0
      %925 = vmatpush1.bf16.xpose.msra.mxu0 %v922
      %926 = vmatprep.subr.bf16.mxu0 0
      %927 = vmatpush1.bf16.xpose.msra.mxu0 0
      %928 = vmatprep.subr.bf16.mxu0 0
      %929 = vmatpush1.bf16.xpose.msra.mxu0 0
      %930 = vmatprep.subr.bf16.mxu0 0
      %931 = vmatpush1.bf16.xpose.msra.mxu0 0
      %932 = vmatprep.subr.bf16.mxu0 0
      %933 = vmatpush1.bf16.xpose.msra.mxu0 0
      %934 = vmatprep.subr.bf16.mxu0 0
      %935 = vmatpush1.bf16.xpose.msra.mxu0 0
      %936 = vmatprep.subr.bf16.mxu0 0
      %937 = vmatpush1.bf16.xpose.msra.mxu0 0
      %938 = vmatprep.subr.bf16.mxu0 0
      %939 = vmatpush1.bf16.xpose.msra.mxu0 0
      %940 = vmatprep.subr.bf16.mxu0 0
      %941 = vmatpush1.bf16.xpose.msra.mxu0 0
      %942 = vmatprep.subr.bf16.mxu0 0
      %943 = vmatpush1.bf16.xpose.msra.mxu0 0
      %944 = vmatprep.subr.bf16.mxu0 0
      %945 = vmatpush1.bf16.xpose.msra.mxu0 0
      %946 = vmatprep.subr.bf16.mxu0 0
      %947 = vmatpush1.bf16.xpose.msra.mxu0 0
      %948 = vmatprep.subr.bf16.mxu0 0
      %949 = vmatpush1.bf16.xpose.msra.mxu0 0
      %950 = vmatprep.subr.bf16.mxu0 0
      %951 = vmatpush1.bf16.xpose.msra.mxu0 0
      %952 = vmatprep.subr.bf16.mxu0 0
      %953 = vmatpush1.bf16.xpose.msra.mxu0 0
      %954 = vmatprep.subr.bf16.mxu0 0
      %955 = vmatpush1.bf16.xpose.msra.mxu0 0
      %956 = vmatprep.mubr.bf16.mxu0 0
      %957 = vmatmul.mubr.bf16.gmra.mrb[0].mxu0 %v919
      %v958 = vpop.f32.mrb[0].mxu0
      %v959 = vadd.f32 0.0, %v958
      %v960 = vpop.f32.mrb[0].mxu0
      %v961 = vpop.f32.mrb[0].mxu0
      %v962 = vpop.f32.mrb[0].mxu0
      %963 = vdwg.mxu0
      %v964 = vunpack.c.l.b16 %v364
      %v965 = vpack.c.b16 %v964, %v964
      %966 = vrot.lane.b32.xlu0 %v965, 96
      %v967 = vpop.permute.xlu0 %966
      %v969 = vsel %vm373, %v364, 0
      %v972 = vsel %vm373, %v967, 0
      %974 = vmatprep.subr.bf16.mxu0 0
      %975 = vmatpush1.bf16.xpose.msra.mxu0 %v972
      %976 = vmatprep.subr.bf16.mxu0 0
      %977 = vmatpush1.bf16.xpose.msra.mxu0 0
      %978 = vmatprep.subr.bf16.mxu0 0
      %979 = vmatpush1.bf16.xpose.msra.mxu0 0
      %980 = vmatprep.subr.bf16.mxu0 0
      %981 = vmatpush1.bf16.xpose.msra.mxu0 0
      %982 = vmatprep.subr.bf16.mxu0 0
      %983 = vmatpush1.bf16.xpose.msra.mxu0 0
      %984 = vmatprep.subr.bf16.mxu0 0
      %985 = vmatpush1.bf16.xpose.msra.mxu0 0
      %986 = vmatprep.subr.bf16.mxu0 0
      %987 = vmatpush1.bf16.xpose.msra.mxu0 0
      %988 = vmatprep.subr.bf16.mxu0 0
      %989 = vmatpush1.bf16.xpose.msra.mxu0 0
      %990 = vmatprep.subr.bf16.mxu0 0
      %991 = vmatpush1.bf16.xpose.msra.mxu0 0
      %992 = vmatprep.subr.bf16.mxu0 0
      %993 = vmatpush1.bf16.xpose.msra.mxu0 0
      %994 = vmatprep.subr.bf16.mxu0 0
      %995 = vmatpush1.bf16.xpose.msra.mxu0 0
      %996 = vmatprep.subr.bf16.mxu0 0
      %997 = vmatpush1.bf16.xpose.msra.mxu0 0
      %998 = vmatprep.subr.bf16.mxu0 0
      %999 = vmatpush1.bf16.xpose.msra.mxu0 0
      %1000 = vmatprep.subr.bf16.mxu0 0
      %1001 = vmatpush1.bf16.xpose.msra.mxu0 0
      %1002 = vmatprep.subr.bf16.mxu0 0
      %1003 = vmatpush1.bf16.xpose.msra.mxu0 0
      %1004 = vmatprep.subr.bf16.mxu0 0
      %1005 = vmatpush1.bf16.xpose.msra.mxu0 0
      %1006 = vmatprep.mubr.bf16.mxu0 0
      %1007 = vmatmul.mubr.bf16.gmra.mrb[0].mxu0 %v969
      %v1008 = vpop.f32.mrb[0].mxu0
      %v1009 = vadd.f32 0.0, %v1008
      %v1010 = vpop.f32.mrb[0].mxu0
      %v1011 = vpop.f32.mrb[0].mxu0
      %v1012 = vpop.f32.mrb[0].mxu0
      %1013 = vdwg.mxu0
      %v1014 = vunpack.c.l.b16 %v366
      %v1015 = vpack.c.b16 %v1014, %v1014
      %1016 = vrot.lane.b32.xlu0 %v1015, 96
      %v1017 = vpop.permute.xlu0 %1016
      %v1019 = vsel %vm373, %v366, 0
      %v1022 = vsel %vm373, %v1017, 0
      %1024 = vmatprep.subr.bf16.mxu0 0
      %1025 = vmatpush1.bf16.xpose.msra.mxu0 %v1022
      %1026 = vmatprep.subr.bf16.mxu0 0
      %1027 = vmatpush1.bf16.xpose.msra.mxu0 0
      %1028 = vmatprep.subr.bf16.mxu0 0
      %1029 = vmatpush1.bf16.xpose.msra.mxu0 0
      %1030 = vmatprep.subr.bf16.mxu0 0
      %1031 = vmatpush1.bf16.xpose.msra.mxu0 0
      %1032 = vmatprep.subr.bf16.mxu0 0
      %1033 = vmatpush1.bf16.xpose.msra.mxu0 0
      %1034 = vmatprep.subr.bf16.mxu0 0
      %1035 = vmatpush1.bf16.xpose.msra.mxu0 0
      %1036 = vmatprep.subr.bf16.mxu0 0
      %1037 = vmatpush1.bf16.xpose.msra.mxu0 0
      %1038 = vmatprep.subr.bf16.mxu0 0
      %1039 = vmatpush1.bf16.xpose.msra.mxu0 0
      %1040 = vmatprep.subr.bf16.mxu0 0
      %1041 = vmatpush1.bf16.xpose.msra.mxu0 0
      %1042 = vmatprep.subr.bf16.mxu0 0
      %1043 = vmatpush1.bf16.xpose.msra.mxu0 0
      %1044 = vmatprep.subr.bf16.mxu0 0
      %1045 = vmatpush1.bf16.xpose.msra.mxu0 0
      %1046 = vmatprep.subr.bf16.mxu0 0
      %1047 = vmatpush1.bf16.xpose.msra.mxu0 0
      %1048 = vmatprep.subr.bf16.mxu0 0
      %1049 = vmatpush1.bf16.xpose.msra.mxu0 0
      %1050 = vmatprep.subr.bf16.mxu0 0
      %1051 = vmatpush1.bf16.xpose.msra.mxu0 0
      %1052 = vmatprep.subr.bf16.mxu0 0
      %1053 = vmatpush1.bf16.xpose.msra.mxu0 0
      %1054 = vmatprep.subr.bf16.mxu0 0
      %1055 = vmatpush1.bf16.xpose.msra.mxu0 0
      %1056 = vmatprep.mubr.bf16.mxu0 0
      %1057 = vmatmul.mubr.bf16.gmra.mrb[0].mxu0 %v1019
      %v1058 = vpop.f32.mrb[0].mxu0
      %v1059 = vadd.f32 0.0, %v1058
      %v1060 = vpop.f32.mrb[0].mxu0
      %v1061 = vpop.f32.mrb[0].mxu0
      %v1062 = vpop.f32.mrb[0].mxu0
      %1063 = vdwg.mxu0
      %v1064 = vunpack.c.l.b16 %v368
      %v1065 = vpack.c.b16 %v1064, %v1064
      %1066 = vrot.lane.b32.xlu0 %v1065, 96
      %v1067 = vpop.permute.xlu0 %1066
      %v1069 = vsel %vm373, %v368, 0
      %v1072 = vsel %vm373, %v1067, 0
      %1074 = vmatprep.subr.bf16.mxu0 0
      %1075 = vmatpush1.bf16.xpose.msra.mxu0 %v1072
      %1076 = vmatprep.subr.bf16.mxu0 0
      %1077 = vmatpush1.bf16.xpose.msra.mxu0 0
      %1078 = vmatprep.subr.bf16.mxu0 0
      %1079 = vmatpush1.bf16.xpose.msra.mxu0 0
      %1080 = vmatprep.subr.bf16.mxu0 0
      %1081 = vmatpush1.bf16.xpose.msra.mxu0 0
      %1082 = vmatprep.subr.bf16.mxu0 0
      %1083 = vmatpush1.bf16.xpose.msra.mxu0 0
      %1084 = vmatprep.subr.bf16.mxu0 0
      %1085 = vmatpush1.bf16.xpose.msra.mxu0 0
      %1086 = vmatprep.subr.bf16.mxu0 0
      %1087 = vmatpush1.bf16.xpose.msra.mxu0 0
      %1088 = vmatprep.subr.bf16.mxu0 0
      %1089 = vmatpush1.bf16.xpose.msra.mxu0 0
      %1090 = vmatprep.subr.bf16.mxu0 0
      %1091 = vmatpush1.bf16.xpose.msra.mxu0 0
      %1092 = vmatprep.subr.bf16.mxu0 0
      %1093 = vmatpush1.bf16.xpose.msra.mxu0 0
      %1094 = vmatprep.subr.bf16.mxu0 0
      %1095 = vmatpush1.bf16.xpose.msra.mxu0 0
      %1096 = vmatprep.subr.bf16.mxu0 0
      %1097 = vmatpush1.bf16.xpose.msra.mxu0 0
      %1098 = vmatprep.subr.bf16.mxu0 0
      %1099 = vmatpush1.bf16.xpose.msra.mxu0 0
      %1100 = vmatprep.subr.bf16.mxu0 0
      %1101 = vmatpush1.bf16.xpose.msra.mxu0 0
      %1102 = vmatprep.subr.bf16.mxu0 0
      %1103 = vmatpush1.bf16.xpose.msra.mxu0 0
      %1104 = vmatprep.subr.bf16.mxu0 0
      %1105 = vmatpush1.bf16.xpose.msra.mxu0 0
      %1106 = vmatprep.mubr.bf16.mxu0 0
      %1107 = vmatmul.mubr.bf16.gmra.mrb[0].mxu0 %v1069
      %v1108 = vpop.f32.mrb[0].mxu0
      %v1109 = vadd.f32 0.0, %v1108
      %v1110 = vpop.f32.mrb[0].mxu0
      %v1111 = vpop.f32.mrb[0].mxu0
      %v1112 = vpop.f32.mrb[0].mxu0
      %1113 = vdwg.mxu0
      %v1114 = vunpack.c.l.b16 %v370
      %v1115 = vpack.c.b16 %v1114, %v1114
      %1116 = vrot.lane.b32.xlu0 %v1115, 96
      %v1117 = vpop.permute.xlu0 %1116
      %v1119 = vsel %vm373, %v370, 0
      %v1122 = vsel %vm373, %v1117, 0
      %1124 = vmatprep.subr.bf16.mxu0 0
      %1125 = vmatpush1.bf16.xpose.msra.mxu0 %v1122
      %1126 = vmatprep.subr.bf16.mxu0 0
      %1127 = vmatpush1.bf16.xpose.msra.mxu0 0
      %1128 = vmatprep.subr.bf16.mxu0 0
      %1129 = vmatpush1.bf16.xpose.msra.mxu0 0
      %1130 = vmatprep.subr.bf16.mxu0 0
      %1131 = vmatpush1.bf16.xpose.msra.mxu0 0
      %1132 = vmatprep.subr.bf16.mxu0 0
      %1133 = vmatpush1.bf16.xpose.msra.mxu0 0
      %1134 = vmatprep.subr.bf16.mxu0 0
      %1135 = vmatpush1.bf16.xpose.msra.mxu0 0
      %1136 = vmatprep.subr.bf16.mxu0 0
      %1137 = vmatpush1.bf16.xpose.msra.mxu0 0
      %1138 = vmatprep.subr.bf16.mxu0 0
      %1139 = vmatpush1.bf16.xpose.msra.mxu0 0
      %1140 = vmatprep.subr.bf16.mxu0 0
      %1141 = vmatpush1.bf16.xpose.msra.mxu0 0
      %1142 = vmatprep.subr.bf16.mxu0 0
      %1143 = vmatpush1.bf16.xpose.msra.mxu0 0
      %1144 = vmatprep.subr.bf16.mxu0 0
      %1145 = vmatpush1.bf16.xpose.msra.mxu0 0
      %1146 = vmatprep.subr.bf16.mxu0 0
      %1147 = vmatpush1.bf16.xpose.msra.mxu0 0
      %1148 = vmatprep.subr.bf16.mxu0 0
      %1149 = vmatpush1.bf16.xpose.msra.mxu0 0
      %1150 = vmatprep.subr.bf16.mxu0 0
      %1151 = vmatpush1.bf16.xpose.msra.mxu0 0
      %1152 = vmatprep.subr.bf16.mxu0 0
      %1153 = vmatpush1.bf16.xpose.msra.mxu0 0
      %1154 = vmatprep.subr.bf16.mxu0 0
      %1155 = vmatpush1.bf16.xpose.msra.mxu0 0
      %1156 = vmatprep.mubr.bf16.mxu0 0
      %1157 = vmatmul.mubr.bf16.gmra.mrb[0].mxu0 %v1119
      %v1158 = vpop.f32.mrb[0].mxu0
      %v1159 = vadd.f32 0.0, %v1158
      %v1160 = vpop.f32.mrb[0].mxu0
      %v1161 = vpop.f32.mrb[0].mxu0
      %v1162 = vpop.f32.mrb[0].mxu0
      %1163 = vdwg.mxu0
      %v1164 = vsel %vm373, %v415, -inf
      %1165 = vmax.xlane.f32.xlu0 %v1164
      %v1166 = vpop.xlane.xlu0 %1165
      %v1167 = vsel %vm373, %v463, -inf
      %1168 = vmax.xlane.f32.xlu0 %v1167
      %v1169 = vpop.xlane.xlu0 %1168
      %v1170 = vsel %vm373, %v511, -inf
      %1171 = vmax.xlane.f32.xlu0 %v1170
      %v1172 = vpop.xlane.xlu0 %1171
      %v1173 = vsel %vm373, %v559, -inf
      %1174 = vmax.xlane.f32.xlu0 %v1173
      %v1175 = vpop.xlane.xlu0 %1174
      %v1176 = vsel %vm373, %v609, -inf
      %1177 = vmax.xlane.f32.xlu0 %v1176
      %v1178 = vpop.xlane.xlu0 %1177
      %v1179 = vsel %vm373, %v659, -inf
      %1180 = vmax.xlane.f32.xlu0 %v1179
      %v1181 = vpop.xlane.xlu0 %1180
      %v1182 = vsel %vm373, %v709, -inf
      %1183 = vmax.xlane.f32.xlu0 %v1182
      %v1184 = vpop.xlane.xlu0 %1183
      %v1185 = vsel %vm373, %v759, -inf
      %1186 = vmax.xlane.f32.xlu0 %v1185
      %v1187 = vpop.xlane.xlu0 %1186
      %v1188 = vsel %vm373, %v809, -inf
      %1189 = vmax.xlane.f32.xlu0 %v1188
      %v1190 = vpop.xlane.xlu0 %1189
      %v1191 = vsel %vm373, %v859, -inf
      %1192 = vmax.xlane.f32.xlu0 %v1191
      %v1193 = vpop.xlane.xlu0 %1192
      %v1194 = vsel %vm373, %v909, -inf
      %1195 = vmax.xlane.f32.xlu0 %v1194
      %v1196 = vpop.xlane.xlu0 %1195
      %v1197 = vsel %vm373, %v959, -inf
      %1198 = vmax.xlane.f32.xlu0 %v1197
      %v1199 = vpop.xlane.xlu0 %1198
      %v1200 = vsel %vm373, %v1009, -inf
      %1201 = vmax.xlane.f32.xlu0 %v1200
      %v1202 = vpop.xlane.xlu0 %1201
      %v1203 = vsel %vm373, %v1059, -inf
      %1204 = vmax.xlane.f32.xlu0 %v1203
      %v1205 = vpop.xlane.xlu0 %1204
      %v1206 = vsel %vm373, %v1109, -inf
      %1207 = vmax.xlane.f32.xlu0 %v1206
      %v1208 = vpop.xlane.xlu0 %1207
      %v1209 = vsel %vm373, %v1159, -inf
      %1210 = vmax.xlane.f32.xlu0 %v1209
      %v1211 = vpop.xlane.xlu0 %1210
      %v1212 = vsub.f32 %v415, %v1166
      %v1213 = vsub.f32 %v463, %v1169
      %v1214 = vsub.f32 %v511, %v1172
      %v1215 = vsub.f32 %v559, %v1175
      %v1216 = vsub.f32 %v609, %v1178
      %v1217 = vsub.f32 %v659, %v1181
      %v1218 = vsub.f32 %v709, %v1184
      %v1219 = vsub.f32 %v759, %v1187
      %v1220 = vsub.f32 %v809, %v1190
      %v1221 = vsub.f32 %v859, %v1193
      %v1222 = vsub.f32 %v909, %v1196
      %v1223 = vsub.f32 %v959, %v1199
      %v1224 = vsub.f32 %v1009, %v1202
      %v1225 = vsub.f32 %v1059, %v1205
      %v1226 = vsub.f32 %v1109, %v1208
      %v1227 = vsub.f32 %v1159, %v1211
      %v1228 = vmul.f32 %v1212, 1.442695
      %v1229 = vpow.pop %v1228
      %v1230 = vmul.f32 %v1213, 1.442695
      %v1231 = vpow.pop %v1230
      %v1232 = vmul.f32 %v1214, 1.442695
      %v1233 = vpow.pop %v1232
      %v1234 = vmul.f32 %v1215, 1.442695
      %v1235 = vpow.pop %v1234
      %v1236 = vmul.f32 %v1216, 1.442695
      %v1237 = vpow.pop %v1236
      %v1238 = vmul.f32 %v1217, 1.442695
      %v1239 = vpow.pop %v1238
      %v1240 = vmul.f32 %v1218, 1.442695
      %v1241 = vpow.pop %v1240
      %v1242 = vmul.f32 %v1219, 1.442695
      %v1243 = vpow.pop %v1242
      %v1244 = vmul.f32 %v1220, 1.442695
      %v1245 = vpow.pop %v1244
      %v1246 = vmul.f32 %v1221, 1.442695
      %v1247 = vpow.pop %v1246
      %v1248 = vmul.f32 %v1222, 1.442695
      %v1249 = vpow.pop %v1248
      %v1250 = vmul.f32 %v1223, 1.442695
      %v1251 = vpow.pop %v1250
      %v1252 = vmul.f32 %v1224, 1.442695
      %v1253 = vpow.pop %v1252
      %v1254 = vmul.f32 %v1225, 1.442695
      %v1255 = vpow.pop %v1254
      %v1256 = vmul.f32 %v1226, 1.442695
      %v1257 = vpow.pop %v1256
      %v1258 = vmul.f32 %v1227, 1.442695
      %v1259 = vpow.pop %v1258
      %v1260 = vsel %vm373, %v1229, 0.0
      %1261 = vadd.xlane.f32.xlu0 %v1260
      %v1262 = vpop.xlane.xlu0 %1261
      %v1263 = vsel %vm373, %v1231, 0.0
      %1264 = vadd.xlane.f32.xlu0 %v1263
      %v1265 = vpop.xlane.xlu0 %1264
      %v1266 = vsel %vm373, %v1233, 0.0
      %1267 = vadd.xlane.f32.xlu0 %v1266
      %v1268 = vpop.xlane.xlu0 %1267
      %v1269 = vsel %vm373, %v1235, 0.0
      %1270 = vadd.xlane.f32.xlu0 %v1269
      %v1271 = vpop.xlane.xlu0 %1270
      %v1272 = vsel %vm373, %v1237, 0.0
      %1273 = vadd.xlane.f32.xlu0 %v1272
      %v1274 = vpop.xlane.xlu0 %1273
      %v1275 = vsel %vm373, %v1239, 0.0
      %1276 = vadd.xlane.f32.xlu0 %v1275
      %v1277 = vpop.xlane.xlu0 %1276
      %v1278 = vsel %vm373, %v1241, 0.0
      %1279 = vadd.xlane.f32.xlu0 %v1278
      %v1280 = vpop.xlane.xlu0 %1279
      %v1281 = vsel %vm373, %v1243, 0.0
      %1282 = vadd.xlane.f32.xlu0 %v1281
      %v1283 = vpop.xlane.xlu0 %1282
      %v1284 = vsel %vm373, %v1245, 0.0
      %1285 = vadd.xlane.f32.xlu0 %v1284
      %v1286 = vpop.xlane.xlu0 %1285
      %v1287 = vsel %vm373, %v1247, 0.0
      %1288 = vadd.xlane.f32.xlu0 %v1287
      %v1289 = vpop.xlane.xlu0 %1288
      %v1290 = vsel %vm373, %v1249, 0.0
      %1291 = vadd.xlane.f32.xlu0 %v1290
      %v1292 = vpop.xlane.xlu0 %1291
      %v1293 = vsel %vm373, %v1251, 0.0
      %1294 = vadd.xlane.f32.xlu0 %v1293
      %v1295 = vpop.xlane.xlu0 %1294
      %v1296 = vsel %vm373, %v1253, 0.0
      %1297 = vadd.xlane.f32.xlu0 %v1296
      %v1298 = vpop.xlane.xlu0 %1297
      %v1299 = vsel %vm373, %v1255, 0.0
      %1300 = vadd.xlane.f32.xlu0 %v1299
      %v1301 = vpop.xlane.xlu0 %1300
      %v1302 = vsel %vm373, %v1257, 0.0
      %1303 = vadd.xlane.f32.xlu0 %v1302
      %v1304 = vpop.xlane.xlu0 %1303
      %v1305 = vsel %vm373, %v1259, 0.0
      %1306 = vadd.xlane.f32.xlu0 %v1305
      %v1307 = vpop.xlane.xlu0 %1306
      %v1308 = vrcp.pop %v1262
      %v1309 = vrcp.pop %v1265
      %v1310 = vrcp.pop %v1268
      %v1311 = vrcp.pop %v1271
      %v1312 = vrcp.pop %v1274
      %v1313 = vrcp.pop %v1277
      %v1314 = vrcp.pop %v1280
      %v1315 = vrcp.pop %v1283
      %v1316 = vrcp.pop %v1286
      %v1317 = vrcp.pop %v1289
      %v1318 = vrcp.pop %v1292
      %v1319 = vrcp.pop %v1295
      %v1320 = vrcp.pop %v1298
      %v1321 = vrcp.pop %v1301
      %v1322 = vrcp.pop %v1304
      %v1323 = vrcp.pop %v1307
      %v1324 = vmul.f32 %v1229, %v1308
      %v1325 = vmul.f32 %v1231, %v1309
      %v1326 = vmul.f32 %v1233, %v1310
      %v1327 = vmul.f32 %v1235, %v1311
      %v1328 = vmul.f32 %v1237, %v1312
      %v1329 = vmul.f32 %v1239, %v1313
      %v1330 = vmul.f32 %v1241, %v1314
      %v1331 = vmul.f32 %v1243, %v1315
      %v1332 = vmul.f32 %v1245, %v1316
      %v1333 = vmul.f32 %v1247, %v1317
      %v1334 = vmul.f32 %v1249, %v1318
      %v1335 = vmul.f32 %v1251, %v1319
      %v1336 = vmul.f32 %v1253, %v1320
      %v1337 = vmul.f32 %v1255, %v1321
      %v1338 = vmul.f32 %v1257, %v1322
      %v1339 = vmul.f32 %v1259, %v1323
      %v1340 = vpack.c.bf16 %v1324, %v1324
      %v1341 = vpack.c.bf16 %v1325, %v1325
      %v1342 = vpack.c.bf16 %v1326, %v1326
      %v1343 = vpack.c.bf16 %v1327, %v1327
      %v1344 = vpack.c.bf16 %v1328, %v1328
      %v1345 = vpack.c.bf16 %v1329, %v1329
      %v1346 = vpack.c.bf16 %v1330, %v1330
      %v1347 = vpack.c.bf16 %v1331, %v1331
      %v1348 = vpack.c.bf16 %v1332, %v1332
      %v1349 = vpack.c.bf16 %v1333, %v1333
      %v1350 = vpack.c.bf16 %v1334, %v1334
      %v1351 = vpack.c.bf16 %v1335, %v1335
      %v1352 = vpack.c.bf16 %v1336, %v1336
      %v1353 = vpack.c.bf16 %v1337, %v1337
      %v1354 = vpack.c.bf16 %v1338, %v1338
      %v1355 = vpack.c.bf16 %v1339, %v1339
      %1356 = vrot.lane.b32.xlu0 %v343, 64
      %v1357 = vpop.permute.xlu0 %1356
      %v1359 = vsel %vm373, %v1340, 0
      %vm1361 = vcmask 1043456
      %v1363 = vsel %vm1361, %v1357, 0
      %1365 = vmatprep.subr.bf16.mxu0 0
      %1366 = vmatpush1.bf16.msra.mxu0 %v1363
      %1367 = vmatprep.subr.bf16.mxu0 0
      %1368 = vmatpush1.bf16.msra.mxu0 0
      %1369 = vmatprep.subr.bf16.mxu0 0
      %1370 = vmatpush1.bf16.msra.mxu0 0
      %1371 = vmatprep.subr.bf16.mxu0 0
      %1372 = vmatpush1.bf16.msra.mxu0 0
      %1373 = vmatprep.subr.bf16.mxu0 0
      %1374 = vmatpush1.bf16.msra.mxu0 0
      %1375 = vmatprep.subr.bf16.mxu0 0
      %1376 = vmatpush1.bf16.msra.mxu0 0
      %1377 = vmatprep.subr.bf16.mxu0 0
      %1378 = vmatpush1.bf16.msra.mxu0 0
      %1379 = vmatprep.subr.bf16.mxu0 0
      %1380 = vmatpush1.bf16.msra.mxu0 0
      %1381 = vmatprep.subr.bf16.mxu0 0
      %1382 = vmatpush1.bf16.msra.mxu0 0
      %1383 = vmatprep.subr.bf16.mxu0 0
      %1384 = vmatpush1.bf16.msra.mxu0 0
      %1385 = vmatprep.subr.bf16.mxu0 0
      %1386 = vmatpush1.bf16.msra.mxu0 0
      %1387 = vmatprep.subr.bf16.mxu0 0
      %1388 = vmatpush1.bf16.msra.mxu0 0
      %1389 = vmatprep.subr.bf16.mxu0 0
      %1390 = vmatpush1.bf16.msra.mxu0 0
      %1391 = vmatprep.subr.bf16.mxu0 0
      %1392 = vmatpush1.bf16.msra.mxu0 0
      %1393 = vmatprep.subr.bf16.mxu0 0
      %1394 = vmatpush1.bf16.msra.mxu0 0
      %1395 = vmatprep.subr.bf16.mxu0 0
      %1396 = vmatpush1.bf16.msra.mxu0 0
      %1397 = vmatprep.mubr.bf16.mxu0 0
      %1398 = vmatmul.mubr.bf16.gmra.mrb[0].mxu0 %v1359
      %v1399 = vpop.f32.mrb[0].mxu0
      %v1400 = vadd.f32 0.0, %v1399
      %v1401 = vpop.f32.mrb[0].mxu0
      %v1402 = vpop.f32.mrb[0].mxu0
      %v1403 = vpop.f32.mrb[0].mxu0
      %1404 = vdwg.mxu0
      %1405 = vrot.lane.b32.xlu0 %v344, 64
      %v1406 = vpop.permute.xlu0 %1405
      %v1408 = vsel %vm373, %v1341, 0
      %v1411 = vsel %vm1361, %v1406, 0
      %1413 = vmatprep.subr.bf16.mxu0 0
      %1414 = vmatpush1.bf16.msra.mxu0 %v1411
      %1415 = vmatprep.subr.bf16.mxu0 0
      %1416 = vmatpush1.bf16.msra.mxu0 0
      %1417 = vmatprep.subr.bf16.mxu0 0
      %1418 = vmatpush1.bf16.msra.mxu0 0
      %1419 = vmatprep.subr.bf16.mxu0 0
      %1420 = vmatpush1.bf16.msra.mxu0 0
      %1421 = vmatprep.subr.bf16.mxu0 0
      %1422 = vmatpush1.bf16.msra.mxu0 0
      %1423 = vmatprep.subr.bf16.mxu0 0
      %1424 = vmatpush1.bf16.msra.mxu0 0
      %1425 = vmatprep.subr.bf16.mxu0 0
      %1426 = vmatpush1.bf16.msra.mxu0 0
      %1427 = vmatprep.subr.bf16.mxu0 0
      %1428 = vmatpush1.bf16.msra.mxu0 0
      %1429 = vmatprep.subr.bf16.mxu0 0
      %1430 = vmatpush1.bf16.msra.mxu0 0
      %1431 = vmatprep.subr.bf16.mxu0 0
      %1432 = vmatpush1.bf16.msra.mxu0 0
      %1433 = vmatprep.subr.bf16.mxu0 0
      %1434 = vmatpush1.bf16.msra.mxu0 0
      %1435 = vmatprep.subr.bf16.mxu0 0
      %1436 = vmatpush1.bf16.msra.mxu0 0
      %1437 = vmatprep.subr.bf16.mxu0 0
      %1438 = vmatpush1.bf16.msra.mxu0 0
      %1439 = vmatprep.subr.bf16.mxu0 0
      %1440 = vmatpush1.bf16.msra.mxu0 0
      %1441 = vmatprep.subr.bf16.mxu0 0
      %1442 = vmatpush1.bf16.msra.mxu0 0
      %1443 = vmatprep.subr.bf16.mxu0 0
      %1444 = vmatpush1.bf16.msra.mxu0 0
      %1445 = vmatprep.mubr.bf16.mxu0 0
      %1446 = vmatmul.mubr.bf16.gmra.mrb[0].mxu0 %v1408
      %v1447 = vpop.f32.mrb[0].mxu0
      %v1448 = vadd.f32 0.0, %v1447
      %v1449 = vpop.f32.mrb[0].mxu0
      %v1450 = vpop.f32.mrb[0].mxu0
      %v1451 = vpop.f32.mrb[0].mxu0
      %1452 = vdwg.mxu0
      %1453 = vrot.lane.b32.xlu0 %v345, 64
      %v1454 = vpop.permute.xlu0 %1453
      %v1456 = vsel %vm373, %v1342, 0
      %v1459 = vsel %vm1361, %v1454, 0
      %1461 = vmatprep.subr.bf16.mxu0 0
      %1462 = vmatpush1.bf16.msra.mxu0 %v1459
      %1463 = vmatprep.subr.bf16.mxu0 0
      %1464 = vmatpush1.bf16.msra.mxu0 0
      %1465 = vmatprep.subr.bf16.mxu0 0
      %1466 = vmatpush1.bf16.msra.mxu0 0
      %1467 = vmatprep.subr.bf16.mxu0 0
      %1468 = vmatpush1.bf16.msra.mxu0 0
      %1469 = vmatprep.subr.bf16.mxu0 0
      %1470 = vmatpush1.bf16.msra.mxu0 0
      %1471 = vmatprep.subr.bf16.mxu0 0
      %1472 = vmatpush1.bf16.msra.mxu0 0
      %1473 = vmatprep.subr.bf16.mxu0 0
      %1474 = vmatpush1.bf16.msra.mxu0 0
      %1475 = vmatprep.subr.bf16.mxu0 0
      %1476 = vmatpush1.bf16.msra.mxu0 0
      %1477 = vmatprep.subr.bf16.mxu0 0
      %1478 = vmatpush1.bf16.msra.mxu0 0
      %1479 = vmatprep.subr.bf16.mxu0 0
      %1480 = vmatpush1.bf16.msra.mxu0 0
      %1481 = vmatprep.subr.bf16.mxu0 0
      %1482 = vmatpush1.bf16.msra.mxu0 0
      %1483 = vmatprep.subr.bf16.mxu0 0
      %1484 = vmatpush1.bf16.msra.mxu0 0
      %1485 = vmatprep.subr.bf16.mxu0 0
      %1486 = vmatpush1.bf16.msra.mxu0 0
      %1487 = vmatprep.subr.bf16.mxu0 0
      %1488 = vmatpush1.bf16.msra.mxu0 0
      %1489 = vmatprep.subr.bf16.mxu0 0
      %1490 = vmatpush1.bf16.msra.mxu0 0
      %1491 = vmatprep.subr.bf16.mxu0 0
      %1492 = vmatpush1.bf16.msra.mxu0 0
      %1493 = vmatprep.mubr.bf16.mxu0 0
      %1494 = vmatmul.mubr.bf16.gmra.mrb[0].mxu0 %v1456
      %v1495 = vpop.f32.mrb[0].mxu0
      %v1496 = vadd.f32 0.0, %v1495
      %v1497 = vpop.f32.mrb[0].mxu0
      %v1498 = vpop.f32.mrb[0].mxu0
      %v1499 = vpop.f32.mrb[0].mxu0
      %1500 = vdwg.mxu0
      %1501 = vrot.lane.b32.xlu0 %v346, 64
      %v1502 = vpop.permute.xlu0 %1501
      %v1504 = vsel %vm373, %v1343, 0
      %v1507 = vsel %vm1361, %v1502, 0
      %1509 = vmatprep.subr.bf16.mxu0 0
      %1510 = vmatpush1.bf16.msra.mxu0 %v1507
      %1511 = vmatprep.subr.bf16.mxu0 0
      %1512 = vmatpush1.bf16.msra.mxu0 0
      %1513 = vmatprep.subr.bf16.mxu0 0
      %1514 = vmatpush1.bf16.msra.mxu0 0
      %1515 = vmatprep.subr.bf16.mxu0 0
      %1516 = vmatpush1.bf16.msra.mxu0 0
      %1517 = vmatprep.subr.bf16.mxu0 0
      %1518 = vmatpush1.bf16.msra.mxu0 0
      %1519 = vmatprep.subr.bf16.mxu0 0
      %1520 = vmatpush1.bf16.msra.mxu0 0
      %1521 = vmatprep.subr.bf16.mxu0 0
      %1522 = vmatpush1.bf16.msra.mxu0 0
      %1523 = vmatprep.subr.bf16.mxu0 0
      %1524 = vmatpush1.bf16.msra.mxu0 0
      %1525 = vmatprep.subr.bf16.mxu0 0
      %1526 = vmatpush1.bf16.msra.mxu0 0
      %1527 = vmatprep.subr.bf16.mxu0 0
      %1528 = vmatpush1.bf16.msra.mxu0 0
      %1529 = vmatprep.subr.bf16.mxu0 0
      %1530 = vmatpush1.bf16.msra.mxu0 0
      %1531 = vmatprep.subr.bf16.mxu0 0
      %1532 = vmatpush1.bf16.msra.mxu0 0
      %1533 = vmatprep.subr.bf16.mxu0 0
      %1534 = vmatpush1.bf16.msra.mxu0 0
      %1535 = vmatprep.subr.bf16.mxu0 0
      %1536 = vmatpush1.bf16.msra.mxu0 0
      %1537 = vmatprep.subr.bf16.mxu0 0
      %1538 = vmatpush1.bf16.msra.mxu0 0
      %1539 = vmatprep.subr.bf16.mxu0 0
      %1540 = vmatpush1.bf16.msra.mxu0 0
      %1541 = vmatprep.mubr.bf16.mxu0 0
      %1542 = vmatmul.mubr.bf16.gmra.mrb[0].mxu0 %v1504
      %v1543 = vpop.f32.mrb[0].mxu0
      %v1544 = vadd.f32 0.0, %v1543
      %v1545 = vpop.f32.mrb[0].mxu0
      %v1546 = vpop.f32.mrb[0].mxu0
      %v1547 = vpop.f32.mrb[0].mxu0
      %1548 = vdwg.mxu0
      %1549 = vrot.lane.b32.xlu0 %v565, 64
      %v1550 = vpop.permute.xlu0 %1549
      %v1552 = vsel %vm373, %v1344, 0
      %v1555 = vsel %vm1361, %v1550, 0
      %1557 = vmatprep.subr.bf16.mxu0 0
      %1558 = vmatpush1.bf16.msra.mxu0 %v1555
      %1559 = vmatprep.subr.bf16.mxu0 0
      %1560 = vmatpush1.bf16.msra.mxu0 0
      %1561 = vmatprep.subr.bf16.mxu0 0
      %1562 = vmatpush1.bf16.msra.mxu0 0
      %1563 = vmatprep.subr.bf16.mxu0 0
      %1564 = vmatpush1.bf16.msra.mxu0 0
      %1565 = vmatprep.subr.bf16.mxu0 0
      %1566 = vmatpush1.bf16.msra.mxu0 0
      %1567 = vmatprep.subr.bf16.mxu0 0
      %1568 = vmatpush1.bf16.msra.mxu0 0
      %1569 = vmatprep.subr.bf16.mxu0 0
      %1570 = vmatpush1.bf16.msra.mxu0 0
      %1571 = vmatprep.subr.bf16.mxu0 0
      %1572 = vmatpush1.bf16.msra.mxu0 0
      %1573 = vmatprep.subr.bf16.mxu0 0
      %1574 = vmatpush1.bf16.msra.mxu0 0
      %1575 = vmatprep.subr.bf16.mxu0 0
      %1576 = vmatpush1.bf16.msra.mxu0 0
      %1577 = vmatprep.subr.bf16.mxu0 0
      %1578 = vmatpush1.bf16.msra.mxu0 0
      %1579 = vmatprep.subr.bf16.mxu0 0
      %1580 = vmatpush1.bf16.msra.mxu0 0
      %1581 = vmatprep.subr.bf16.mxu0 0
      %1582 = vmatpush1.bf16.msra.mxu0 0
      %1583 = vmatprep.subr.bf16.mxu0 0
      %1584 = vmatpush1.bf16.msra.mxu0 0
      %1585 = vmatprep.subr.bf16.mxu0 0
      %1586 = vmatpush1.bf16.msra.mxu0 0
      %1587 = vmatprep.subr.bf16.mxu0 0
      %1588 = vmatpush1.bf16.msra.mxu0 0
      %1589 = vmatprep.mubr.bf16.mxu0 0
      %1590 = vmatmul.mubr.bf16.gmra.mrb[0].mxu0 %v1552
      %v1591 = vpop.f32.mrb[0].mxu0
      %v1592 = vadd.f32 0.0, %v1591
      %v1593 = vpop.f32.mrb[0].mxu0
      %v1594 = vpop.f32.mrb[0].mxu0
      %v1595 = vpop.f32.mrb[0].mxu0
      %1596 = vdwg.mxu0
      %1597 = vrot.lane.b32.xlu0 %v615, 64
      %v1598 = vpop.permute.xlu0 %1597
      %v1600 = vsel %vm373, %v1345, 0
      %v1603 = vsel %vm1361, %v1598, 0
      %1605 = vmatprep.subr.bf16.mxu0 0
      %1606 = vmatpush1.bf16.msra.mxu0 %v1603
      %1607 = vmatprep.subr.bf16.mxu0 0
      %1608 = vmatpush1.bf16.msra.mxu0 0
      %1609 = vmatprep.subr.bf16.mxu0 0
      %1610 = vmatpush1.bf16.msra.mxu0 0
      %1611 = vmatprep.subr.bf16.mxu0 0
      %1612 = vmatpush1.bf16.msra.mxu0 0
      %1613 = vmatprep.subr.bf16.mxu0 0
      %1614 = vmatpush1.bf16.msra.mxu0 0
      %1615 = vmatprep.subr.bf16.mxu0 0
      %1616 = vmatpush1.bf16.msra.mxu0 0
      %1617 = vmatprep.subr.bf16.mxu0 0
      %1618 = vmatpush1.bf16.msra.mxu0 0
      %1619 = vmatprep.subr.bf16.mxu0 0
      %1620 = vmatpush1.bf16.msra.mxu0 0
      %1621 = vmatprep.subr.bf16.mxu0 0
      %1622 = vmatpush1.bf16.msra.mxu0 0
      %1623 = vmatprep.subr.bf16.mxu0 0
      %1624 = vmatpush1.bf16.msra.mxu0 0
      %1625 = vmatprep.subr.bf16.mxu0 0
      %1626 = vmatpush1.bf16.msra.mxu0 0
      %1627 = vmatprep.subr.bf16.mxu0 0
      %1628 = vmatpush1.bf16.msra.mxu0 0
      %1629 = vmatprep.subr.bf16.mxu0 0
      %1630 = vmatpush1.bf16.msra.mxu0 0
      %1631 = vmatprep.subr.bf16.mxu0 0
      %1632 = vmatpush1.bf16.msra.mxu0 0
      %1633 = vmatprep.subr.bf16.mxu0 0
      %1634 = vmatpush1.bf16.msra.mxu0 0
      %1635 = vmatprep.subr.bf16.mxu0 0
      %1636 = vmatpush1.bf16.msra.mxu0 0
      %1637 = vmatprep.mubr.bf16.mxu0 0
      %1638 = vmatmul.mubr.bf16.gmra.mrb[0].mxu0 %v1600
      %v1639 = vpop.f32.mrb[0].mxu0
      %v1640 = vadd.f32 0.0, %v1639
      %v1641 = vpop.f32.mrb[0].mxu0
      %v1642 = vpop.f32.mrb[0].mxu0
      %v1643 = vpop.f32.mrb[0].mxu0
      %1644 = vdwg.mxu0
      %1645 = vrot.lane.b32.xlu0 %v665, 64
      %v1646 = vpop.permute.xlu0 %1645
      %v1648 = vsel %vm373, %v1346, 0
      %v1651 = vsel %vm1361, %v1646, 0
      %1653 = vmatprep.subr.bf16.mxu0 0
      %1654 = vmatpush1.bf16.msra.mxu0 %v1651
      %1655 = vmatprep.subr.bf16.mxu0 0
      %1656 = vmatpush1.bf16.msra.mxu0 0
      %1657 = vmatprep.subr.bf16.mxu0 0
      %1658 = vmatpush1.bf16.msra.mxu0 0
      %1659 = vmatprep.subr.bf16.mxu0 0
      %1660 = vmatpush1.bf16.msra.mxu0 0
      %1661 = vmatprep.subr.bf16.mxu0 0
      %1662 = vmatpush1.bf16.msra.mxu0 0
      %1663 = vmatprep.subr.bf16.mxu0 0
      %1664 = vmatpush1.bf16.msra.mxu0 0
      %1665 = vmatprep.subr.bf16.mxu0 0
      %1666 = vmatpush1.bf16.msra.mxu0 0
      %1667 = vmatprep.subr.bf16.mxu0 0
      %1668 = vmatpush1.bf16.msra.mxu0 0
      %1669 = vmatprep.subr.bf16.mxu0 0
      %1670 = vmatpush1.bf16.msra.mxu0 0
      %1671 = vmatprep.subr.bf16.mxu0 0
      %1672 = vmatpush1.bf16.msra.mxu0 0
      %1673 = vmatprep.subr.bf16.mxu0 0
      %1674 = vmatpush1.bf16.msra.mxu0 0
      %1675 = vmatprep.subr.bf16.mxu0 0
      %1676 = vmatpush1.bf16.msra.mxu0 0
      %1677 = vmatprep.subr.bf16.mxu0 0
      %1678 = vmatpush1.bf16.msra.mxu0 0
      %1679 = vmatprep.subr.bf16.mxu0 0
      %1680 = vmatpush1.bf16.msra.mxu0 0
      %1681 = vmatprep.subr.bf16.mxu0 0
      %1682 = vmatpush1.bf16.msra.mxu0 0
      %1683 = vmatprep.subr.bf16.mxu0 0
      %1684 = vmatpush1.bf16.msra.mxu0 0
      %1685 = vmatprep.mubr.bf16.mxu0 0
      %1686 = vmatmul.mubr.bf16.gmra.mrb[0].mxu0 %v1648
      %v1687 = vpop.f32.mrb[0].mxu0
      %v1688 = vadd.f32 0.0, %v1687
      %v1689 = vpop.f32.mrb[0].mxu0
      %v1690 = vpop.f32.mrb[0].mxu0
      %v1691 = vpop.f32.mrb[0].mxu0
      %1692 = vdwg.mxu0
      %1693 = vrot.lane.b32.xlu0 %v715, 64
      %v1694 = vpop.permute.xlu0 %1693
      %v1696 = vsel %vm373, %v1347, 0
      %v1699 = vsel %vm1361, %v1694, 0
      %1701 = vmatprep.subr.bf16.mxu0 0
      %1702 = vmatpush1.bf16.msra.mxu0 %v1699
      %1703 = vmatprep.subr.bf16.mxu0 0
      %1704 = vmatpush1.bf16.msra.mxu0 0
      %1705 = vmatprep.subr.bf16.mxu0 0
      %1706 = vmatpush1.bf16.msra.mxu0 0
      %1707 = vmatprep.subr.bf16.mxu0 0
      %1708 = vmatpush1.bf16.msra.mxu0 0
      %1709 = vmatprep.subr.bf16.mxu0 0
      %1710 = vmatpush1.bf16.msra.mxu0 0
      %1711 = vmatprep.subr.bf16.mxu0 0
      %1712 = vmatpush1.bf16.msra.mxu0 0
      %1713 = vmatprep.subr.bf16.mxu0 0
      %1714 = vmatpush1.bf16.msra.mxu0 0
      %1715 = vmatprep.subr.bf16.mxu0 0
      %1716 = vmatpush1.bf16.msra.mxu0 0
      %1717 = vmatprep.subr.bf16.mxu0 0
      %1718 = vmatpush1.bf16.msra.mxu0 0
      %1719 = vmatprep.subr.bf16.mxu0 0
      %1720 = vmatpush1.bf16.msra.mxu0 0
      %1721 = vmatprep.subr.bf16.mxu0 0
      %1722 = vmatpush1.bf16.msra.mxu0 0
      %1723 = vmatprep.subr.bf16.mxu0 0
      %1724 = vmatpush1.bf16.msra.mxu0 0
      %1725 = vmatprep.subr.bf16.mxu0 0
      %1726 = vmatpush1.bf16.msra.mxu0 0
      %1727 = vmatprep.subr.bf16.mxu0 0
      %1728 = vmatpush1.bf16.msra.mxu0 0
      %1729 = vmatprep.subr.bf16.mxu0 0
      %1730 = vmatpush1.bf16.msra.mxu0 0
      %1731 = vmatprep.subr.bf16.mxu0 0
      %1732 = vmatpush1.bf16.msra.mxu0 0
      %1733 = vmatprep.mubr.bf16.mxu0 0
      %1734 = vmatmul.mubr.bf16.gmra.mrb[0].mxu0 %v1696
      %v1735 = vpop.f32.mrb[0].mxu0
      %v1736 = vadd.f32 0.0, %v1735
      %v1737 = vpop.f32.mrb[0].mxu0
      %v1738 = vpop.f32.mrb[0].mxu0
      %v1739 = vpop.f32.mrb[0].mxu0
      %1740 = vdwg.mxu0
      %1741 = vrot.lane.b32.xlu0 %v765, 64
      %v1742 = vpop.permute.xlu0 %1741
      %v1744 = vsel %vm373, %v1348, 0
      %v1747 = vsel %vm1361, %v1742, 0
      %1749 = vmatprep.subr.bf16.mxu0 0
      %1750 = vmatpush1.bf16.msra.mxu0 %v1747
      %1751 = vmatprep.subr.bf16.mxu0 0
      %1752 = vmatpush1.bf16.msra.mxu0 0
      %1753 = vmatprep.subr.bf16.mxu0 0
      %1754 = vmatpush1.bf16.msra.mxu0 0
      %1755 = vmatprep.subr.bf16.mxu0 0
      %1756 = vmatpush1.bf16.msra.mxu0 0
      %1757 = vmatprep.subr.bf16.mxu0 0
      %1758 = vmatpush1.bf16.msra.mxu0 0
      %1759 = vmatprep.subr.bf16.mxu0 0
      %1760 = vmatpush1.bf16.msra.mxu0 0
      %1761 = vmatprep.subr.bf16.mxu0 0
      %1762 = vmatpush1.bf16.msra.mxu0 0
      %1763 = vmatprep.subr.bf16.mxu0 0
      %1764 = vmatpush1.bf16.msra.mxu0 0
      %1765 = vmatprep.subr.bf16.mxu0 0
      %1766 = vmatpush1.bf16.msra.mxu0 0
      %1767 = vmatprep.subr.bf16.mxu0 0
      %1768 = vmatpush1.bf16.msra.mxu0 0
      %1769 = vmatprep.subr.bf16.mxu0 0
      %1770 = vmatpush1.bf16.msra.mxu0 0
      %1771 = vmatprep.subr.bf16.mxu0 0
      %1772 = vmatpush1.bf16.msra.mxu0 0
      %1773 = vmatprep.subr.bf16.mxu0 0
      %1774 = vmatpush1.bf16.msra.mxu0 0
      %1775 = vmatprep.subr.bf16.mxu0 0
      %1776 = vmatpush1.bf16.msra.mxu0 0
      %1777 = vmatprep.subr.bf16.mxu0 0
      %1778 = vmatpush1.bf16.msra.mxu0 0
      %1779 = vmatprep.subr.bf16.mxu0 0
      %1780 = vmatpush1.bf16.msra.mxu0 0
      %1781 = vmatprep.mubr.bf16.mxu0 0
      %1782 = vmatmul.mubr.bf16.gmra.mrb[0].mxu0 %v1744
      %v1783 = vpop.f32.mrb[0].mxu0
      %v1784 = vadd.f32 0.0, %v1783
      %v1785 = vpop.f32.mrb[0].mxu0
      %v1786 = vpop.f32.mrb[0].mxu0
      %v1787 = vpop.f32.mrb[0].mxu0
      %1788 = vdwg.mxu0
      %1789 = vrot.lane.b32.xlu0 %v815, 64
      %v1790 = vpop.permute.xlu0 %1789
      %v1792 = vsel %vm373, %v1349, 0
      %v1795 = vsel %vm1361, %v1790, 0
      %1797 = vmatprep.subr.bf16.mxu0 0
      %1798 = vmatpush1.bf16.msra.mxu0 %v1795
      %1799 = vmatprep.subr.bf16.mxu0 0
      %1800 = vmatpush1.bf16.msra.mxu0 0
      %1801 = vmatprep.subr.bf16.mxu0 0
      %1802 = vmatpush1.bf16.msra.mxu0 0
      %1803 = vmatprep.subr.bf16.mxu0 0
      %1804 = vmatpush1.bf16.msra.mxu0 0
      %1805 = vmatprep.subr.bf16.mxu0 0
      %1806 = vmatpush1.bf16.msra.mxu0 0
      %1807 = vmatprep.subr.bf16.mxu0 0
      %1808 = vmatpush1.bf16.msra.mxu0 0
      %1809 = vmatprep.subr.bf16.mxu0 0
      %1810 = vmatpush1.bf16.msra.mxu0 0
      %1811 = vmatprep.subr.bf16.mxu0 0
      %1812 = vmatpush1.bf16.msra.mxu0 0
      %1813 = vmatprep.subr.bf16.mxu0 0
      %1814 = vmatpush1.bf16.msra.mxu0 0
      %1815 = vmatprep.subr.bf16.mxu0 0
      %1816 = vmatpush1.bf16.msra.mxu0 0
      %1817 = vmatprep.subr.bf16.mxu0 0
      %1818 = vmatpush1.bf16.msra.mxu0 0
      %1819 = vmatprep.subr.bf16.mxu0 0
      %1820 = vmatpush1.bf16.msra.mxu0 0
      %1821 = vmatprep.subr.bf16.mxu0 0
      %1822 = vmatpush1.bf16.msra.mxu0 0
      %1823 = vmatprep.subr.bf16.mxu0 0
      %1824 = vmatpush1.bf16.msra.mxu0 0
      %1825 = vmatprep.subr.bf16.mxu0 0
      %1826 = vmatpush1.bf16.msra.mxu0 0
      %1827 = vmatprep.subr.bf16.mxu0 0
      %1828 = vmatpush1.bf16.msra.mxu0 0
      %1829 = vmatprep.mubr.bf16.mxu0 0
      %1830 = vmatmul.mubr.bf16.gmra.mrb[0].mxu0 %v1792
      %v1831 = vpop.f32.mrb[0].mxu0
      %v1832 = vadd.f32 0.0, %v1831
      %v1833 = vpop.f32.mrb[0].mxu0
      %v1834 = vpop.f32.mrb[0].mxu0
      %v1835 = vpop.f32.mrb[0].mxu0
      %1836 = vdwg.mxu0
      %1837 = vrot.lane.b32.xlu0 %v865, 64
      %v1838 = vpop.permute.xlu0 %1837
      %v1840 = vsel %vm373, %v1350, 0
      %v1843 = vsel %vm1361, %v1838, 0
      %1845 = vmatprep.subr.bf16.mxu0 0
      %1846 = vmatpush1.bf16.msra.mxu0 %v1843
      %1847 = vmatprep.subr.bf16.mxu0 0
      %1848 = vmatpush1.bf16.msra.mxu0 0
      %1849 = vmatprep.subr.bf16.mxu0 0
      %1850 = vmatpush1.bf16.msra.mxu0 0
      %1851 = vmatprep.subr.bf16.mxu0 0
      %1852 = vmatpush1.bf16.msra.mxu0 0
      %1853 = vmatprep.subr.bf16.mxu0 0
      %1854 = vmatpush1.bf16.msra.mxu0 0
      %1855 = vmatprep.subr.bf16.mxu0 0
      %1856 = vmatpush1.bf16.msra.mxu0 0
      %1857 = vmatprep.subr.bf16.mxu0 0
      %1858 = vmatpush1.bf16.msra.mxu0 0
      %1859 = vmatprep.subr.bf16.mxu0 0
      %1860 = vmatpush1.bf16.msra.mxu0 0
      %1861 = vmatprep.subr.bf16.mxu0 0
      %1862 = vmatpush1.bf16.msra.mxu0 0
      %1863 = vmatprep.subr.bf16.mxu0 0
      %1864 = vmatpush1.bf16.msra.mxu0 0
      %1865 = vmatprep.subr.bf16.mxu0 0
      %1866 = vmatpush1.bf16.msra.mxu0 0
      %1867 = vmatprep.subr.bf16.mxu0 0
      %1868 = vmatpush1.bf16.msra.mxu0 0
      %1869 = vmatprep.subr.bf16.mxu0 0
      %1870 = vmatpush1.bf16.msra.mxu0 0
      %1871 = vmatprep.subr.bf16.mxu0 0
      %1872 = vmatpush1.bf16.msra.mxu0 0
      %1873 = vmatprep.subr.bf16.mxu0 0
      %1874 = vmatpush1.bf16.msra.mxu0 0
      %1875 = vmatprep.subr.bf16.mxu0 0
      %1876 = vmatpush1.bf16.msra.mxu0 0
      %1877 = vmatprep.mubr.bf16.mxu0 0
      %1878 = vmatmul.mubr.bf16.gmra.mrb[0].mxu0 %v1840
      %v1879 = vpop.f32.mrb[0].mxu0
      %v1880 = vadd.f32 0.0, %v1879
      %v1881 = vpop.f32.mrb[0].mxu0
      %v1882 = vpop.f32.mrb[0].mxu0
      %v1883 = vpop.f32.mrb[0].mxu0
      %1884 = vdwg.mxu0
      %1885 = vrot.lane.b32.xlu0 %v915, 64
      %v1886 = vpop.permute.xlu0 %1885
      %v1888 = vsel %vm373, %v1351, 0
      %v1891 = vsel %vm1361, %v1886, 0
      %1893 = vmatprep.subr.bf16.mxu0 0
      %1894 = vmatpush1.bf16.msra.mxu0 %v1891
      %1895 = vmatprep.subr.bf16.mxu0 0
      %1896 = vmatpush1.bf16.msra.mxu0 0
      %1897 = vmatprep.subr.bf16.mxu0 0
      %1898 = vmatpush1.bf16.msra.mxu0 0
      %1899 = vmatprep.subr.bf16.mxu0 0
      %1900 = vmatpush1.bf16.msra.mxu0 0
      %1901 = vmatprep.subr.bf16.mxu0 0
      %1902 = vmatpush1.bf16.msra.mxu0 0
      %1903 = vmatprep.subr.bf16.mxu0 0
      %1904 = vmatpush1.bf16.msra.mxu0 0
      %1905 = vmatprep.subr.bf16.mxu0 0
      %1906 = vmatpush1.bf16.msra.mxu0 0
      %1907 = vmatprep.subr.bf16.mxu0 0
      %1908 = vmatpush1.bf16.msra.mxu0 0
      %1909 = vmatprep.subr.bf16.mxu0 0
      %1910 = vmatpush1.bf16.msra.mxu0 0
      %1911 = vmatprep.subr.bf16.mxu0 0
      %1912 = vmatpush1.bf16.msra.mxu0 0
      %1913 = vmatprep.subr.bf16.mxu0 0
      %1914 = vmatpush1.bf16.msra.mxu0 0
      %1915 = vmatprep.subr.bf16.mxu0 0
      %1916 = vmatpush1.bf16.msra.mxu0 0
      %1917 = vmatprep.subr.bf16.mxu0 0
      %1918 = vmatpush1.bf16.msra.mxu0 0
      %1919 = vmatprep.subr.bf16.mxu0 0
      %1920 = vmatpush1.bf16.msra.mxu0 0
      %1921 = vmatprep.subr.bf16.mxu0 0
      %1922 = vmatpush1.bf16.msra.mxu0 0
      %1923 = vmatprep.subr.bf16.mxu0 0
      %1924 = vmatpush1.bf16.msra.mxu0 0
      %1925 = vmatprep.mubr.bf16.mxu0 0
      %1926 = vmatmul.mubr.bf16.gmra.mrb[0].mxu0 %v1888
      %v1927 = vpop.f32.mrb[0].mxu0
      %v1928 = vadd.f32 0.0, %v1927
      %v1929 = vpop.f32.mrb[0].mxu0
      %v1930 = vpop.f32.mrb[0].mxu0
      %v1931 = vpop.f32.mrb[0].mxu0
      %1932 = vdwg.mxu0
      %1933 = vrot.lane.b32.xlu0 %v965, 64
      %v1934 = vpop.permute.xlu0 %1933
      %v1936 = vsel %vm373, %v1352, 0
      %v1939 = vsel %vm1361, %v1934, 0
      %1941 = vmatprep.subr.bf16.mxu0 0
      %1942 = vmatpush1.bf16.msra.mxu0 %v1939
      %1943 = vmatprep.subr.bf16.mxu0 0
      %1944 = vmatpush1.bf16.msra.mxu0 0
      %1945 = vmatprep.subr.bf16.mxu0 0
      %1946 = vmatpush1.bf16.msra.mxu0 0
      %1947 = vmatprep.subr.bf16.mxu0 0
      %1948 = vmatpush1.bf16.msra.mxu0 0
      %1949 = vmatprep.subr.bf16.mxu0 0
      %1950 = vmatpush1.bf16.msra.mxu0 0
      %1951 = vmatprep.subr.bf16.mxu0 0
      %1952 = vmatpush1.bf16.msra.mxu0 0
      %1953 = vmatprep.subr.bf16.mxu0 0
      %1954 = vmatpush1.bf16.msra.mxu0 0
      %1955 = vmatprep.subr.bf16.mxu0 0
      %1956 = vmatpush1.bf16.msra.mxu0 0
      %1957 = vmatprep.subr.bf16.mxu0 0
      %1958 = vmatpush1.bf16.msra.mxu0 0
      %1959 = vmatprep.subr.bf16.mxu0 0
      %1960 = vmatpush1.bf16.msra.mxu0 0
      %1961 = vmatprep.subr.bf16.mxu0 0
      %1962 = vmatpush1.bf16.msra.mxu0 0
      %1963 = vmatprep.subr.bf16.mxu0 0
      %1964 = vmatpush1.bf16.msra.mxu0 0
      %1965 = vmatprep.subr.bf16.mxu0 0
      %1966 = vmatpush1.bf16.msra.mxu0 0
      %1967 = vmatprep.subr.bf16.mxu0 0
      %1968 = vmatpush1.bf16.msra.mxu0 0
      %1969 = vmatprep.subr.bf16.mxu0 0
      %1970 = vmatpush1.bf16.msra.mxu0 0
      %1971 = vmatprep.subr.bf16.mxu0 0
      %1972 = vmatpush1.bf16.msra.mxu0 0
      %1973 = vmatprep.mubr.bf16.mxu0 0
      %1974 = vmatmul.mubr.bf16.gmra.mrb[0].mxu0 %v1936
      %v1975 = vpop.f32.mrb[0].mxu0
      %v1976 = vadd.f32 0.0, %v1975
      %v1977 = vpop.f32.mrb[0].mxu0
      %v1978 = vpop.f32.mrb[0].mxu0
      %v1979 = vpop.f32.mrb[0].mxu0
      %1980 = vdwg.mxu0
      %1981 = vrot.lane.b32.xlu0 %v1015, 64
      %v1982 = vpop.permute.xlu0 %1981
      %v1984 = vsel %vm373, %v1353, 0
      %v1987 = vsel %vm1361, %v1982, 0
      %1989 = vmatprep.subr.bf16.mxu0 0
      %1990 = vmatpush1.bf16.msra.mxu0 %v1987
      %1991 = vmatprep.subr.bf16.mxu0 0
      %1992 = vmatpush1.bf16.msra.mxu0 0
      %1993 = vmatprep.subr.bf16.mxu0 0
      %1994 = vmatpush1.bf16.msra.mxu0 0
      %1995 = vmatprep.subr.bf16.mxu0 0
      %1996 = vmatpush1.bf16.msra.mxu0 0
      %1997 = vmatprep.subr.bf16.mxu0 0
      %1998 = vmatpush1.bf16.msra.mxu0 0
      %1999 = vmatprep.subr.bf16.mxu0 0
      %2000 = vmatpush1.bf16.msra.mxu0 0
      %2001 = vmatprep.subr.bf16.mxu0 0
      %2002 = vmatpush1.bf16.msra.mxu0 0
      %2003 = vmatprep.subr.bf16.mxu0 0
      %2004 = vmatpush1.bf16.msra.mxu0 0
      %2005 = vmatprep.subr.bf16.mxu0 0
      %2006 = vmatpush1.bf16.msra.mxu0 0
      %2007 = vmatprep.subr.bf16.mxu0 0
      %2008 = vmatpush1.bf16.msra.mxu0 0
      %2009 = vmatprep.subr.bf16.mxu0 0
      %2010 = vmatpush1.bf16.msra.mxu0 0
      %2011 = vmatprep.subr.bf16.mxu0 0
      %2012 = vmatpush1.bf16.msra.mxu0 0
      %2013 = vmatprep.subr.bf16.mxu0 0
      %2014 = vmatpush1.bf16.msra.mxu0 0
      %2015 = vmatprep.subr.bf16.mxu0 0
      %2016 = vmatpush1.bf16.msra.mxu0 0
      %2017 = vmatprep.subr.bf16.mxu0 0
      %2018 = vmatpush1.bf16.msra.mxu0 0
      %2019 = vmatprep.subr.bf16.mxu0 0
      %2020 = vmatpush1.bf16.msra.mxu0 0
      %2021 = vmatprep.mubr.bf16.mxu0 0
      %2022 = vmatmul.mubr.bf16.gmra.mrb[0].mxu0 %v1984
      %v2023 = vpop.f32.mrb[0].mxu0
      %v2024 = vadd.f32 0.0, %v2023
      %v2025 = vpop.f32.mrb[0].mxu0
      %v2026 = vpop.f32.mrb[0].mxu0
      %v2027 = vpop.f32.mrb[0].mxu0
      %2028 = vdwg.mxu0
      %2029 = vrot.lane.b32.xlu0 %v1065, 64
      %v2030 = vpop.permute.xlu0 %2029
      %v2032 = vsel %vm373, %v1354, 0
      %v2035 = vsel %vm1361, %v2030, 0
      %2037 = vmatprep.subr.bf16.mxu0 0
      %2038 = vmatpush1.bf16.msra.mxu0 %v2035
      %2039 = vmatprep.subr.bf16.mxu0 0
      %2040 = vmatpush1.bf16.msra.mxu0 0
      %2041 = vmatprep.subr.bf16.mxu0 0
      %2042 = vmatpush1.bf16.msra.mxu0 0
      %2043 = vmatprep.subr.bf16.mxu0 0
      %2044 = vmatpush1.bf16.msra.mxu0 0
      %2045 = vmatprep.subr.bf16.mxu0 0
      %2046 = vmatpush1.bf16.msra.mxu0 0
      %2047 = vmatprep.subr.bf16.mxu0 0
      %2048 = vmatpush1.bf16.msra.mxu0 0
      %2049 = vmatprep.subr.bf16.mxu0 0
      %2050 = vmatpush1.bf16.msra.mxu0 0
      %2051 = vmatprep.subr.bf16.mxu0 0
      %2052 = vmatpush1.bf16.msra.mxu0 0
      %2053 = vmatprep.subr.bf16.mxu0 0
      %2054 = vmatpush1.bf16.msra.mxu0 0
      %2055 = vmatprep.subr.bf16.mxu0 0
      %2056 = vmatpush1.bf16.msra.mxu0 0
      %2057 = vmatprep.subr.bf16.mxu0 0
      %2058 = vmatpush1.bf16.msra.mxu0 0
      %2059 = vmatprep.subr.bf16.mxu0 0
      %2060 = vmatpush1.bf16.msra.mxu0 0
      %2061 = vmatprep.subr.bf16.mxu0 0
      %2062 = vmatpush1.bf16.msra.mxu0 0
      %2063 = vmatprep.subr.bf16.mxu0 0
      %2064 = vmatpush1.bf16.msra.mxu0 0
      %2065 = vmatprep.subr.bf16.mxu0 0
      %2066 = vmatpush1.bf16.msra.mxu0 0
      %2067 = vmatprep.subr.bf16.mxu0 0
      %2068 = vmatpush1.bf16.msra.mxu0 0
      %2069 = vmatprep.mubr.bf16.mxu0 0
      %2070 = vmatmul.mubr.bf16.gmra.mrb[0].mxu0 %v2032
      %v2071 = vpop.f32.mrb[0].mxu0
      %v2072 = vadd.f32 0.0, %v2071
      %v2073 = vpop.f32.mrb[0].mxu0
      %v2074 = vpop.f32.mrb[0].mxu0
      %v2075 = vpop.f32.mrb[0].mxu0
      %2076 = vdwg.mxu0
      %2077 = vrot.lane.b32.xlu0 %v1115, 64
      %v2078 = vpop.permute.xlu0 %2077
      %v2080 = vsel %vm373, %v1355, 0
      %v2083 = vsel %vm1361, %v2078, 0
      %2085 = vmatprep.subr.bf16.mxu0 0
      %2086 = vmatpush1.bf16.msra.mxu0 %v2083
      %2087 = vmatprep.subr.bf16.mxu0 0
      %2088 = vmatpush1.bf16.msra.mxu0 0
      %2089 = vmatprep.subr.bf16.mxu0 0
      %2090 = vmatpush1.bf16.msra.mxu0 0
      %2091 = vmatprep.subr.bf16.mxu0 0
      %2092 = vmatpush1.bf16.msra.mxu0 0
      %2093 = vmatprep.subr.bf16.mxu0 0
      %2094 = vmatpush1.bf16.msra.mxu0 0
      %2095 = vmatprep.subr.bf16.mxu0 0
      %2096 = vmatpush1.bf16.msra.mxu0 0
      %2097 = vmatprep.subr.bf16.mxu0 0
      %2098 = vmatpush1.bf16.msra.mxu0 0
      %2099 = vmatprep.subr.bf16.mxu0 0
      %2100 = vmatpush1.bf16.msra.mxu0 0
      %2101 = vmatprep.subr.bf16.mxu0 0
      %2102 = vmatpush1.bf16.msra.mxu0 0
      %2103 = vmatprep.subr.bf16.mxu0 0
      %2104 = vmatpush1.bf16.msra.mxu0 0
      %2105 = vmatprep.subr.bf16.mxu0 0
      %2106 = vmatpush1.bf16.msra.mxu0 0
      %2107 = vmatprep.subr.bf16.mxu0 0
      %2108 = vmatpush1.bf16.msra.mxu0 0
      %2109 = vmatprep.subr.bf16.mxu0 0
      %2110 = vmatpush1.bf16.msra.mxu0 0
      %2111 = vmatprep.subr.bf16.mxu0 0
      %2112 = vmatpush1.bf16.msra.mxu0 0
      %2113 = vmatprep.subr.bf16.mxu0 0
      %2114 = vmatpush1.bf16.msra.mxu0 0
      %2115 = vmatprep.subr.bf16.mxu0 0
      %2116 = vmatpush1.bf16.msra.mxu0 0
      %2117 = vmatprep.mubr.bf16.mxu0 0
      %2118 = vmatmul.mubr.bf16.gmra.mrb[0].mxu0 %v2080
      %v2119 = vpop.f32.mrb[0].mxu0
      %v2120 = vadd.f32 0.0, %v2119
      %v2121 = vpop.f32.mrb[0].mxu0
      %v2122 = vpop.f32.mrb[0].mxu0
      %v2123 = vpop.f32.mrb[0].mxu0
      %2124 = vdwg.mxu0
      %2129 = vrot.lane.b32.xlu0 %v1592, 8
      %v2130 = vpop.permute.xlu0 %2129
      %2131 = vrot.lane.b32.xlu0 %v1640, 8
      %v2132 = vpop.permute.xlu0 %2131
      %2133 = vrot.lane.b32.xlu0 %v1688, 8
      %v2134 = vpop.permute.xlu0 %2133
      %2135 = vrot.lane.b32.xlu0 %v1736, 8
      %v2136 = vpop.permute.xlu0 %2135
      %2145 = vrot.lane.b32.xlu0 %v1784, 16
      %v2146 = vpop.permute.xlu0 %2145
      %2147 = vrot.lane.b32.xlu0 %v1832, 16
      %v2148 = vpop.permute.xlu0 %2147
      %2149 = vrot.lane.b32.xlu0 %v1880, 16
      %v2150 = vpop.permute.xlu0 %2149
      %2151 = vrot.lane.b32.xlu0 %v1928, 16
      %v2152 = vpop.permute.xlu0 %2151
      %2161 = vrot.lane.b32.xlu0 %v1976, 24
      %v2162 = vpop.permute.xlu0 %2161
      %2163 = vrot.lane.b32.xlu0 %v2024, 24
      %v2164 = vpop.permute.xlu0 %2163
      %2165 = vrot.lane.b32.xlu0 %v2072, 24
      %v2166 = vpop.permute.xlu0 %2165
      %2167 = vrot.lane.b32.xlu0 %v2120, 24
      %v2168 = vpop.permute.xlu0 %2167
      %v2173 = vsel %vm373, %v1400, %v2130
      %v2174 = vsel %vm373, %v1448, %v2132
      %v2175 = vsel %vm373, %v1496, %v2134
      %v2176 = vsel %vm373, %v1544, %v2136
      %vm2177 = vcmask 130048
      %v2178 = vsel %vm2177, %v2173, %v2146
      %v2179 = vsel %vm2177, %v2174, %v2148
      %v2180 = vsel %vm2177, %v2175, %v2150
      %v2181 = vsel %vm2177, %v2176, %v2152
      %vm2182 = vcmask 195584
      %v2183 = vsel %vm2182, %v2178, %v2162
      %v2184 = vsel %vm2182, %v2179, %v2164
      %v2185 = vsel %vm2182, %v2180, %v2166
      %v2186 = vsel %vm2182, %v2181, %v2168
      %v2187 = vpack.c.bf16 %v2184, %v2183
      %v2188 = vpack.c.bf16 %v2186, %v2185
      %v2189 = vld [vmem:[%s2] sm:$0xf]
      %v2190 = vld [vmem:[%s2 + $0x4] sm:$0xf]
      %v2191 = vld [vmem:[%s2 + $0x8] sm:$0xf]
      %v2192 = vld [vmem:[%s2 + $0xc] sm:$0xf]
      %v2193 = vlaneseq
      %v2194 = vshrl.u32 %v2193, 7
      %v2195 = vsub.s32 0, %v2194
      %v2196 = vrot.slane %v260, %v2195
      %v2201 = vunpack.c.l.b16 %v2189
      %v2202 = vunpack.c.l.b16 %v2190
      %v2203 = vunpack.c.l.b16 %v2191
      %v2204 = vunpack.c.l.b16 %v2192
      %v2205 = vpack.c.b16 %v2202, %v2201
      %v2206 = vpack.c.b16 %v2204, %v2203
      %v2210 = vsel %vm279, %v2187, 0
      %v2213 = vsel %vm279, %v2188, 0
      %2215 = vmatprep.subr.bf16.mxu0 0
      %2216 = vmatpush1.bf16.msra.mxu0 %v2205
      %2217 = vmatprep.subr.bf16.mxu0 0
      %2218 = vmatpush1.bf16.msra.mxu0 %v2206
      %2219 = vmatprep.subr.bf16.mxu0 0
      %2220 = vmatpush1.bf16.msra.mxu0 0
      %2221 = vmatprep.subr.bf16.mxu0 0
      %2222 = vmatpush1.bf16.msra.mxu0 0
      %2223 = vmatprep.subr.bf16.mxu0 0
      %2224 = vmatpush1.bf16.msra.mxu0 0
      %2225 = vmatprep.subr.bf16.mxu0 0
      %2226 = vmatpush1.bf16.msra.mxu0 0
      %2227 = vmatprep.subr.bf16.mxu0 0
      %2228 = vmatpush1.bf16.msra.mxu0 0
      %2229 = vmatprep.subr.bf16.mxu0 0
      %2230 = vmatpush1.bf16.msra.mxu0 0
      %2231 = vmatprep.subr.bf16.mxu0 0
      %2232 = vmatpush1.bf16.msra.mxu0 0
      %2233 = vmatprep.subr.bf16.mxu0 0
      %2234 = vmatpush1.bf16.msra.mxu0 0
      %2235 = vmatprep.subr.bf16.mxu0 0
      %2236 = vmatpush1.bf16.msra.mxu0 0
      %2237 = vmatprep.subr.bf16.mxu0 0
      %2238 = vmatpush1.bf16.msra.mxu0 0
      %2239 = vmatprep.subr.bf16.mxu0 0
      %2240 = vmatpush1.bf16.msra.mxu0 0
      %2241 = vmatprep.subr.bf16.mxu0 0
      %2242 = vmatpush1.bf16.msra.mxu0 0
      %2243 = vmatprep.subr.bf16.mxu0 0
      %2244 = vmatpush1.bf16.msra.mxu0 0
      %2245 = vmatprep.subr.bf16.mxu0 0
      %2246 = vmatpush1.bf16.msra.mxu0 0
      %2247 = vmatprep.mubr.bf16.mxu0 0
      %2248 = vmatmul.mubr.bf16.gmra.mrb[0].mxu0 %v2210
      %v2249 = vpop.f32.mrb[0].mxu0
      %v2250 = vadd.f32 %v2196, %v2249
      %v2251 = vpop.f32.mrb[0].mxu0
      %v2252 = vpop.f32.mrb[0].mxu0
      %v2253 = vadd.f32 %v2196, %v2252
      %v2254 = vpop.f32.mrb[0].mxu0
      %2255 = vmatprep.mubr.bf16.mxu0 0
      %2256 = vmatmul.mubr.bf16.gmra.mrb[0].mxu0 %v2213
      %v2257 = vpop.f32.mrb[0].mxu0
      %v2258 = vadd.f32 %v2196, %v2257
      %v2259 = vpop.f32.mrb[0].mxu0
      %v2260 = vpop.f32.mrb[0].mxu0
      %v2261 = vadd.f32 %v2196, %v2260
      %v2262 = vpop.f32.mrb[0].mxu0
      %2263 = vdwg.mxu0
      %v2264 = vadd.f32 %v256, %v2250
      %v2265 = vadd.f32 %v257, %v2253
      %v2266 = vadd.f32 %v258, %v2258
      %v2267 = vadd.f32 %v259, %v2261
      %v2268 = vsel %vm279, %v2264, 0.0
      %v2269 = vrot.slane %v2268, 4
      %v2270 = vadd.f32 %v2268, %v2269
      %v2271 = vrot.slane %v2270, 2
      %v2272 = vadd.f32 %v2270, %v2271
      %v2273 = vrot.slane %v2272, 1
      %v2274 = vadd.f32 %v2272, %v2273
      %v2275 = vsel %vm279, %v2265, 0.0
      %v2276 = vrot.slane %v2275, 4
      %v2277 = vadd.f32 %v2275, %v2276
      %v2278 = vrot.slane %v2277, 2
      %v2279 = vadd.f32 %v2277, %v2278
      %v2280 = vrot.slane %v2279, 1
      %v2281 = vadd.f32 %v2279, %v2280
      %v2282 = vsel %vm279, %v2266, 0.0
      %v2283 = vrot.slane %v2282, 4
      %v2284 = vadd.f32 %v2282, %v2283
      %v2285 = vrot.slane %v2284, 2
      %v2286 = vadd.f32 %v2284, %v2285
      %v2287 = vrot.slane %v2286, 1
      %v2288 = vadd.f32 %v2286, %v2287
      %v2289 = vsel %vm279, %v2267, 0.0
      %v2290 = vrot.slane %v2289, 4
      %v2291 = vadd.f32 %v2289, %v2290
      %v2292 = vrot.slane %v2291, 2
      %v2293 = vadd.f32 %v2291, %v2292
      %v2294 = vrot.slane %v2293, 1
      %v2295 = vadd.f32 %v2293, %v2294
      %v2296 = vrcp.pop 8.0
      %v2297 = vmul.f32 %v2274, %v2296
      %v2298 = vmul.f32 %v2281, %v2296
      %v2299 = vmul.f32 %v2288, %v2296
      %v2300 = vmul.f32 %v2295, %v2296
      %v2301 = vsub.f32 %v2264, %v2297
      %v2302 = vsub.f32 %v2265, %v2298
      %v2303 = vsub.f32 %v2266, %v2299
      %v2304 = vsub.f32 %v2267, %v2300
      %v2305 = vmul.f32 %v2301, %v2301
      %v2306 = vmul.f32 %v2302, %v2302
      %v2307 = vmul.f32 %v2303, %v2303
      %v2308 = vmul.f32 %v2304, %v2304
      %v2309 = vsel %vm279, %v2305, 0.0
      %v2310 = vrot.slane %v2309, 4
      %v2311 = vadd.f32 %v2309, %v2310
      %v2312 = vrot.slane %v2311, 2
      %v2313 = vadd.f32 %v2311, %v2312
      %v2314 = vrot.slane %v2313, 1
      %v2315 = vadd.f32 %v2313, %v2314
      %v2316 = vsel %vm279, %v2306, 0.0
      %v2317 = vrot.slane %v2316, 4
      %v2318 = vadd.f32 %v2316, %v2317
      %v2319 = vrot.slane %v2318, 2
      %v2320 = vadd.f32 %v2318, %v2319
      %v2321 = vrot.slane %v2320, 1
      %v2322 = vadd.f32 %v2320, %v2321
      %v2323 = vsel %vm279, %v2307, 0.0
      %v2324 = vrot.slane %v2323, 4
      %v2325 = vadd.f32 %v2323, %v2324
      %v2326 = vrot.slane %v2325, 2
      %v2327 = vadd.f32 %v2325, %v2326
      %v2328 = vrot.slane %v2327, 1
      %v2329 = vadd.f32 %v2327, %v2328
      %v2330 = vsel %vm279, %v2308, 0.0
      %v2331 = vrot.slane %v2330, 4
      %v2332 = vadd.f32 %v2330, %v2331
      %v2333 = vrot.slane %v2332, 2
      %v2334 = vadd.f32 %v2332, %v2333
      %v2335 = vrot.slane %v2334, 1
      %v2336 = vadd.f32 %v2334, %v2335
      %v2337 = vmul.f32 %v2315, %v2296
      %v2338 = vmul.f32 %v2322, %v2296
      %v2339 = vmul.f32 %v2329, %v2296
      %v2340 = vmul.f32 %v2336, %v2296
      %v2341 = vadd.f32 %v2337, 1e-05
      %v2342 = vadd.f32 %v2338, 1e-05
      %v2343 = vadd.f32 %v2339, 1e-05
      %v2344 = vadd.f32 %v2340, 1e-05
      %v2345 = vrsqrt.pop %v2341
      %v2346 = vrsqrt.pop %v2342
      %v2347 = vrsqrt.pop %v2343
      %v2348 = vrsqrt.pop %v2344
      %v2349 = vmul.f32 %v2301, %v2345
      %v2350 = vmul.f32 %v2302, %v2346
      %v2351 = vmul.f32 %v2303, %v2347
      %v2352 = vmul.f32 %v2304, %v2348
      %v2353 = vlaneseq
      %v2354 = vshrl.u32 %v2353, 7
      %v2355 = vsub.s32 1, %v2354
      %v2356 = vrot.slane %v260, %v2355
      %v2357 = vmul.f32 %v2349, %v2356
      %v2358 = vmul.f32 %v2350, %v2356
      %v2359 = vmul.f32 %v2351, %v2356
      %v2360 = vmul.f32 %v2352, %v2356
      %v2361 = vlaneseq
      %v2362 = vshrl.u32 %v2361, 7
      %v2363 = vsub.s32 2, %v2362
      %v2364 = vrot.slane %v260, %v2363
      %v2365 = vadd.f32 %v2357, %v2364
      %v2366 = vadd.f32 %v2358, %v2364
      %v2367 = vadd.f32 %v2359, %v2364
      %v2368 = vadd.f32 %v2360, %v2364
      %v2369 = vpack.c.bf16 %v2366, %v2365
      %v2370 = vpack.c.bf16 %v2368, %v2367
      %v2371 = vld [vmem:[%s3] sm:$0xf]
      %v2372 = vld [vmem:[%s3 + $0x4] sm:$0xf]
      %v2373 = vld [vmem:[%s3 + $0x8] sm:$0xf]
      %v2374 = vld [vmem:[%s3 + $0xc] sm:$0xf]
      %v2375 = vlaneseq
      %v2376 = vshrl.u32 %v2375, 7
      %v2377 = vsub.s32 3, %v2376
      %v2378 = vrot.slane %v260, %v2377
      %v2383 = vunpack.c.l.b16 %v2371
      %v2384 = vunpack.c.l.b16 %v2372
      %v2385 = vunpack.c.l.b16 %v2373
      %v2386 = vunpack.c.l.b16 %v2374
      %v2387 = vpack.c.b16 %v2384, %v2383
      %v2388 = vpack.c.b16 %v2386, %v2385
      %v2392 = vsel %vm279, %v2369, 0
      %v2395 = vsel %vm279, %v2370, 0
      %2397 = vmatprep.subr.bf16.mxu0 0
      %2398 = vmatpush1.bf16.msra.mxu0 %v2387
      %2399 = vmatprep.subr.bf16.mxu0 0
      %2400 = vmatpush1.bf16.msra.mxu0 %v2388
      %2401 = vmatprep.subr.bf16.mxu0 0
      %2402 = vmatpush1.bf16.msra.mxu0 0
      %2403 = vmatprep.subr.bf16.mxu0 0
      %2404 = vmatpush1.bf16.msra.mxu0 0
      %2405 = vmatprep.subr.bf16.mxu0 0
      %2406 = vmatpush1.bf16.msra.mxu0 0
      %2407 = vmatprep.subr.bf16.mxu0 0
      %2408 = vmatpush1.bf16.msra.mxu0 0
      %2409 = vmatprep.subr.bf16.mxu0 0
      %2410 = vmatpush1.bf16.msra.mxu0 0
      %2411 = vmatprep.subr.bf16.mxu0 0
      %2412 = vmatpush1.bf16.msra.mxu0 0
      %2413 = vmatprep.subr.bf16.mxu0 0
      %2414 = vmatpush1.bf16.msra.mxu0 0
      %2415 = vmatprep.subr.bf16.mxu0 0
      %2416 = vmatpush1.bf16.msra.mxu0 0
      %2417 = vmatprep.subr.bf16.mxu0 0
      %2418 = vmatpush1.bf16.msra.mxu0 0
      %2419 = vmatprep.subr.bf16.mxu0 0
      %2420 = vmatpush1.bf16.msra.mxu0 0
      %2421 = vmatprep.subr.bf16.mxu0 0
      %2422 = vmatpush1.bf16.msra.mxu0 0
      %2423 = vmatprep.subr.bf16.mxu0 0
      %2424 = vmatpush1.bf16.msra.mxu0 0
      %2425 = vmatprep.subr.bf16.mxu0 0
      %2426 = vmatpush1.bf16.msra.mxu0 0
      %2427 = vmatprep.subr.bf16.mxu0 0
      %2428 = vmatpush1.bf16.msra.mxu0 0
      %2429 = vmatprep.mubr.bf16.mxu0 0
      %2430 = vmatmul.mubr.bf16.gmra.mrb[0].mxu0 %v2392
      %v2431 = vpop.f32.mrb[0].mxu0
      %v2432 = vadd.f32 %v2378, %v2431
      %v2433 = vpop.f32.mrb[0].mxu0
      %v2434 = vpop.f32.mrb[0].mxu0
      %v2435 = vadd.f32 %v2378, %v2434
      %v2436 = vpop.f32.mrb[0].mxu0
      %2437 = vmatprep.mubr.bf16.mxu0 0
      %2438 = vmatmul.mubr.bf16.gmra.mrb[0].mxu0 %v2395
      %v2439 = vpop.f32.mrb[0].mxu0
      %v2440 = vadd.f32 %v2378, %v2439
      %v2441 = vpop.f32.mrb[0].mxu0
      %v2442 = vpop.f32.mrb[0].mxu0
      %v2443 = vadd.f32 %v2378, %v2442
      %v2444 = vpop.f32.mrb[0].mxu0
      %2445 = vdwg.mxu0
      %v2446 = vmax.f32 %v2432, 0.0
      %v2447 = vmax.f32 %v2435, 0.0
      %v2448 = vmax.f32 %v2440, 0.0
      %v2449 = vmax.f32 %v2443, 0.0
      %v2450 = vpack.c.bf16 %v2447, %v2446
      %v2451 = vpack.c.bf16 %v2449, %v2448
      %v2452 = vld [vmem:[%s4] sm:$0xf]
      %v2453 = vld [vmem:[%s4 + $0x4] sm:$0xf]
      %v2454 = vld [vmem:[%s4 + $0x8] sm:$0xf]
      %v2455 = vld [vmem:[%s4 + $0xc] sm:$0xf]
      %v2456 = vld [vmem:[%s4 + $0x10] sm:$0xf]
      %v2457 = vld [vmem:[%s4 + $0x14] sm:$0xf]
      %v2458 = vld [vmem:[%s4 + $0x18] sm:$0xf]
      %v2459 = vld [vmem:[%s4 + $0x1c] sm:$0xf]
      %v2460 = vlaneseq
      %v2461 = vshrl.u32 %v2460, 7
      %v2462 = vsub.s32 4, %v2461
      %v2463 = vrot.slane %v260, %v2462
      %v2472 = vunpack.c.l.b16 %v2452
      %v2473 = vunpack.c.l.b16 %v2453
      %v2474 = vunpack.c.l.b16 %v2454
      %v2475 = vunpack.c.l.b16 %v2455
      %v2476 = vunpack.c.l.b16 %v2456
      %v2477 = vunpack.c.l.b16 %v2457
      %v2478 = vunpack.c.l.b16 %v2458
      %v2479 = vunpack.c.l.b16 %v2459
      %v2480 = vpack.c.b16 %v2473, %v2472
      %v2481 = vpack.c.b16 %v2475, %v2474
      %v2482 = vpack.c.b16 %v2477, %v2476
      %v2483 = vpack.c.b16 %v2479, %v2478
      %vm2488 = vcmask 523264
      %v2490 = vsel %vm2488, %v2450, 0
      %v2493 = vsel %vm2488, %v2451, 0
      %2495 = vmatprep.subr.bf16.mxu0 0
      %2496 = vmatpush1.bf16.msra.mxu0 %v2480
      %2497 = vmatprep.subr.bf16.mxu0 0
      %2498 = vmatpush1.bf16.msra.mxu0 %v2481
      %2499 = vmatprep.subr.bf16.mxu0 0
      %2500 = vmatpush1.bf16.msra.mxu0 %v2482
      %2501 = vmatprep.subr.bf16.mxu0 0
      %2502 = vmatpush1.bf16.msra.mxu0 %v2483
      %2503 = vmatprep.subr.bf16.mxu0 0
      %2504 = vmatpush1.bf16.msra.mxu0 0
      %2505 = vmatprep.subr.bf16.mxu0 0
      %2506 = vmatpush1.bf16.msra.mxu0 0
      %2507 = vmatprep.subr.bf16.mxu0 0
      %2508 = vmatpush1.bf16.msra.mxu0 0
      %2509 = vmatprep.subr.bf16.mxu0 0
      %2510 = vmatpush1.bf16.msra.mxu0 0
      %2511 = vmatprep.subr.bf16.mxu0 0
      %2512 = vmatpush1.bf16.msra.mxu0 0
      %2513 = vmatprep.subr.bf16.mxu0 0
      %2514 = vmatpush1.bf16.msra.mxu0 0
      %2515 = vmatprep.subr.bf16.mxu0 0
      %2516 = vmatpush1.bf16.msra.mxu0 0
      %2517 = vmatprep.subr.bf16.mxu0 0
      %2518 = vmatpush1.bf16.msra.mxu0 0
      %2519 = vmatprep.subr.bf16.mxu0 0
      %2520 = vmatpush1.bf16.msra.mxu0 0
      %2521 = vmatprep.subr.bf16.mxu0 0
      %2522 = vmatpush1.bf16.msra.mxu0 0
      %2523 = vmatprep.subr.bf16.mxu0 0
      %2524 = vmatpush1.bf16.msra.mxu0 0
      %2525 = vmatprep.subr.bf16.mxu0 0
      %2526 = vmatpush1.bf16.msra.mxu0 0
      %2527 = vmatprep.mubr.bf16.mxu0 0
      %2528 = vmatmul.mubr.bf16.gmra.mrb[0].mxu0 %v2490
      %v2529 = vpop.f32.mrb[0].mxu0
      %v2530 = vadd.f32 %v2463, %v2529
      %v2531 = vpop.f32.mrb[0].mxu0
      %v2532 = vpop.f32.mrb[0].mxu0
      %v2533 = vadd.f32 %v2463, %v2532
      %v2534 = vpop.f32.mrb[0].mxu0
      %2535 = vmatprep.mubr.bf16.mxu0 0
      %2536 = vmatmul.mubr.bf16.gmra.mrb[0].mxu0 %v2493
      %v2537 = vpop.f32.mrb[0].mxu0
      %v2538 = vadd.f32 %v2463, %v2537
      %v2539 = vpop.f32.mrb[0].mxu0
      %v2540 = vpop.f32.mrb[0].mxu0
      %v2541 = vadd.f32 %v2463, %v2540
      %v2542 = vpop.f32.mrb[0].mxu0
      %2543 = vdwg.mxu0
      %v2544 = vadd.f32 %v2365, %v2530
      %v2545 = vadd.f32 %v2366, %v2533
      %v2546 = vadd.f32 %v2367, %v2538
      %v2547 = vadd.f32 %v2368, %v2541
      %v2548 = vsel %vm279, %v2544, 0.0
      %v2549 = vrot.slane %v2548, 4
      %v2550 = vadd.f32 %v2548, %v2549
      %v2551 = vrot.slane %v2550, 2
      %v2552 = vadd.f32 %v2550, %v2551
      %v2553 = vrot.slane %v2552, 1
      %v2554 = vadd.f32 %v2552, %v2553
      %v2555 = vsel %vm279, %v2545, 0.0
      %v2556 = vrot.slane %v2555, 4
      %v2557 = vadd.f32 %v2555, %v2556
      %v2558 = vrot.slane %v2557, 2
      %v2559 = vadd.f32 %v2557, %v2558
      %v2560 = vrot.slane %v2559, 1
      %v2561 = vadd.f32 %v2559, %v2560
      %v2562 = vsel %vm279, %v2546, 0.0
      %v2563 = vrot.slane %v2562, 4
      %v2564 = vadd.f32 %v2562, %v2563
      %v2565 = vrot.slane %v2564, 2
      %v2566 = vadd.f32 %v2564, %v2565
      %v2567 = vrot.slane %v2566, 1
      %v2568 = vadd.f32 %v2566, %v2567
      %v2569 = vsel %vm279, %v2547, 0.0
      %v2570 = vrot.slane %v2569, 4
      %v2571 = vadd.f32 %v2569, %v2570
      %v2572 = vrot.slane %v2571, 2
      %v2573 = vadd.f32 %v2571, %v2572
      %v2574 = vrot.slane %v2573, 1
      %v2575 = vadd.f32 %v2573, %v2574
      %v2576 = vmul.f32 %v2554, %v2296
      %v2577 = vmul.f32 %v2561, %v2296
      %v2578 = vmul.f32 %v2568, %v2296
      %v2579 = vmul.f32 %v2575, %v2296
      %v2580 = vsub.f32 %v2544, %v2576
      %v2581 = vsub.f32 %v2545, %v2577
      %v2582 = vsub.f32 %v2546, %v2578
      %v2583 = vsub.f32 %v2547, %v2579
      %v2584 = vmul.f32 %v2580, %v2580
      %v2585 = vmul.f32 %v2581, %v2581
      %v2586 = vmul.f32 %v2582, %v2582
      %v2587 = vmul.f32 %v2583, %v2583
      %v2588 = vsel %vm279, %v2584, 0.0
      %v2589 = vrot.slane %v2588, 4
      %v2590 = vadd.f32 %v2588, %v2589
      %v2591 = vrot.slane %v2590, 2
      %v2592 = vadd.f32 %v2590, %v2591
      %v2593 = vrot.slane %v2592, 1
      %v2594 = vadd.f32 %v2592, %v2593
      %v2595 = vsel %vm279, %v2585, 0.0
      %v2596 = vrot.slane %v2595, 4
      %v2597 = vadd.f32 %v2595, %v2596
      %v2598 = vrot.slane %v2597, 2
      %v2599 = vadd.f32 %v2597, %v2598
      %v2600 = vrot.slane %v2599, 1
      %v2601 = vadd.f32 %v2599, %v2600
      %v2602 = vsel %vm279, %v2586, 0.0
      %v2603 = vrot.slane %v2602, 4
      %v2604 = vadd.f32 %v2602, %v2603
      %v2605 = vrot.slane %v2604, 2
      %v2606 = vadd.f32 %v2604, %v2605
      %v2607 = vrot.slane %v2606, 1
      %v2608 = vadd.f32 %v2606, %v2607
      %v2609 = vsel %vm279, %v2587, 0.0
      %v2610 = vrot.slane %v2609, 4
      %v2611 = vadd.f32 %v2609, %v2610
      %v2612 = vrot.slane %v2611, 2
      %v2613 = vadd.f32 %v2611, %v2612
      %v2614 = vrot.slane %v2613, 1
      %v2615 = vadd.f32 %v2613, %v2614
      %v2616 = vmul.f32 %v2594, %v2296
      %v2617 = vmul.f32 %v2601, %v2296
      %v2618 = vmul.f32 %v2608, %v2296
      %v2619 = vmul.f32 %v2615, %v2296
      %v2620 = vadd.f32 %v2616, 1e-05
      %v2621 = vadd.f32 %v2617, 1e-05
      %v2622 = vadd.f32 %v2618, 1e-05
      %v2623 = vadd.f32 %v2619, 1e-05
      %v2624 = vrsqrt.pop %v2620
      %v2625 = vrsqrt.pop %v2621
      %v2626 = vrsqrt.pop %v2622
      %v2627 = vrsqrt.pop %v2623
      %v2628 = vmul.f32 %v2580, %v2624
      %v2629 = vmul.f32 %v2581, %v2625
      %v2630 = vmul.f32 %v2582, %v2626
      %v2631 = vmul.f32 %v2583, %v2627
      %v2632 = vlaneseq
      %v2633 = vshrl.u32 %v2632, 7
      %v2634 = vsub.s32 5, %v2633
      %v2635 = vrot.slane %v260, %v2634
      %v2636 = vmul.f32 %v2628, %v2635
      %v2637 = vmul.f32 %v2629, %v2635
      %v2638 = vmul.f32 %v2630, %v2635
      %v2639 = vmul.f32 %v2631, %v2635
      %v2640 = vlaneseq
      %v2641 = vshrl.u32 %v2640, 7
      %v2642 = vsub.s32 6, %v2641
      %v2643 = vrot.slane %v260, %v2642
      %v2644 = vadd.f32 %v2636, %v2643
      %v2645 = vadd.f32 %v2637, %v2643
      %v2646 = vadd.f32 %v2638, %v2643
      %v2647 = vadd.f32 %v2639, %v2643
      %2648 = vst.msk [vmem:[%s253] sm:$0xff] %vm279, %v2644
      %2649 = vst.msk [vmem:[%s253 + $0x8] sm:$0xff] %vm279, %v2645
      %2650 = vst.msk [vmem:[%s253 + $0x10] sm:$0xff] %vm279, %v2646
      %2651 = vst.msk [vmem:[%s253 + $0x18] sm:$0xff] %vm279, %v2647
      %s2652 = smul.u32 4, %s17
      %p2653 = scmp.lt.s32.totalorder %s2652, 7
      %s2654 = scalar_select %p2653, %s2652, 7
      %s2655 = smul.addr %s2654, 8
      %s2656 = scalar_lea.vmem %s6, %s2655
      // Predicated region
      $region45: #{tpu_custom_call.1} parent=43 // pred_check
        %p2657 = pneg %p166
      $region46: #{tpu_custom_call.1} parent=43 // pred_check_branch
        %2659 = sbr.rel (%p2657) target = $region48
      $region47: #{tpu_custom_call.1} parent=43 // pred_region
        %s2660 = smul.u32 4, %s17
      $region48: #{tpu_custom_call.1} parent=43 // pred_fallthru
        _
    $region44: #{tpu_custom_call.1} parent=5 // pred_fallthru
      _
    %p2661 = scmp.le.s32.totalorder 2, %s12
    // Predicated region
    $region49: #{tpu_custom_call.1} parent=5 // pred_check
      %p2662 = pneg %p2661
    $region50: #{tpu_custom_call.1} parent=5 // pred_check_branch
      %2664 = sbr.rel (%p2662) target = $region52
    $region51: #{tpu_custom_call.1} parent=5 // pred_region
      %s2665 = ssub.s32 %s12, 2
      // Predicated region
      $region53: #{tpu_custom_call.1} parent=51 // pred_check
        %p2666 = pneg %p172
      $region54: #{tpu_custom_call.1} parent=51 // pred_check_branch
        %2668 = sbr.rel (%p2666) target = $region56
      $region55: #{tpu_custom_call.1} parent=51 // pred_region
        %s2669 = smul.u32 4, %s18
        %p2670 = scmp.lt.s32.totalorder %s2669, 7
        %s2671 = scalar_select %p2670, %s2669, 7
        %s2672 = smul.addr %s2671, 8
        %s2673 = scalar_lea.vmem %s6, %s2672
      $region56: #{tpu_custom_call.1} parent=51 // pred_fallthru
        _
    $region52: #{tpu_custom_call.1} parent=5 // pred_fallthru
      _
  $region6: #{tpu_custom_call.1} parent=0 // loop_footer
    %s16 = sadd.s32 1, %s12
  $region7: #{tpu_custom_call.1} parent=0 // loop_footer_branch
    %11 = sbr.rel target = $region3
  $region8: #{tpu_custom_call.1} parent=0 // loop_exit
    _

</llo_original>
